<compile_context>
chip_gen: v5e
topology: v5e:2x2
jax: 0.10.0
libtpu: 0.0.40
codegen_flags: <defaults>
</compile_context>

<pallas_src>
import functools

import jax
import jax.numpy as jnp
from jax.experimental import pallas as pl
from jax.experimental.pallas import tpu as pltpu

BN_EPS = 1e-5
L2_EPS = 1e-12


# ----------------------------------------------------------------------------
# Stage 1: BN1 + ReLU + partial FC1 (K-streaming, per-core partial sums)
# ----------------------------------------------------------------------------
def _stage1_kernel(inv_b, nk, kpc, tk, in_size, needs_mask, has_phantom,
                   y_ref,        # (B, TK)   f32/bf16, K-streamed
                   bn1_ref,      # (2, TK)   f32, K-streamed: row0=gamma, row1=beta
                   w1_ref,       # (TK, H)   bf16 or int8, K-streamed
                   part_ref):    # (B, H)    f32, per-core partial (out, resident over k)
    c = pl.program_id(0)
    k = pl.program_id(1)
    kg = c * kpc + k                                   # global K-tile index

    @pl.when(k == 0)
    def _init():
        part_ref[...] = jnp.zeros_like(part_ref)

    def _accumulate():
        y = y_ref[...].astype(jnp.float32)             # (B, TK)
        if needs_mask:
            col = jax.lax.broadcasted_iota(jnp.int32, (1, tk), 1)
            valid_col = col < (in_size - kg * tk)      # (1, TK) bool
            y = jnp.where(valid_col, y, 0.0)

        # BN1 (training-mode batch stats) — two-pass variance for robustness.
        mu = jnp.sum(y, axis=0, keepdims=True) * inv_b
        d = y - mu
        var = jnp.sum(d * d, axis=0, keepdims=True) * inv_b
        bn_scale = bn1_ref[0:1, :] * jax.lax.rsqrt(var + BN_EPS)
        a = jnp.maximum(d * bn_scale + bn1_ref[1:2, :], 0.0)   # BN1 + ReLU (f32)

        w = w1_ref[...]
        if w.dtype != jnp.bfloat16:
            # int8 -> bf16 is exact (|q| <= 127); VPU cast hides under the DMA.
            w = w.astype(jnp.bfloat16)
        if needs_mask:
            a = jnp.where(valid_col, a, 0.0)           # kill padded-column activations
            row = jax.lax.broadcasted_iota(jnp.int32, (tk, 1), 0)
            w = jnp.where(row < (in_size - kg * tk), w, jnp.zeros_like(w))

        part_ref[...] += jnp.dot(a.astype(jnp.bfloat16), w,
                                 preferred_element_type=jnp.float32)

    if has_phantom:
        # nk % NC != 0 -> some (c, k) pairs map past the last real tile.
        pl.when(kg < nk)(_accumulate)
    else:
        _accumulate()


# ----------------------------------------------------------------------------
# Stage 2: combine partials, W1 scale, +fb1, BN2, ReLU, FC2, L2-norm (tiny)
# ----------------------------------------------------------------------------
def _stage2_kernel(out_scale, inv_b,
                   parts_ref,    # (NC, B, H) f32
                   w1s_ref,      # (1, H)     f32 per-output-channel W1 scale (ones for bf16)
                   fb1_ref,      # (1, H)     f32
                   bn2_ref,      # (2, H)     f32: row0=gamma, row1=beta
                   w2_ref,       # (H, E)     bf16
                   fb2_ref,      # (1, E)     f32
                   o_ref):       # (B, E)     f32
    h = jnp.sum(parts_ref[...], axis=0)                        # (B, H) f32
    h = h * w1s_ref[...] + fb1_ref[...]                        # dequant scale + bias

    mu = jnp.sum(h, axis=0, keepdims=True) * inv_b             # BN2 (two-pass var)
    d = h - mu
    var = jnp.sum(d * d, axis=0, keepdims=True) * inv_b
    sc = bn2_ref[0:1, :] * jax.lax.rsqrt(var + BN_EPS)
    h = jnp.maximum(d * sc + bn2_ref[1:2, :], 0.0)             # BN2 + ReLU

    z = jnp.dot(h.astype(jnp.bfloat16), w2_ref[...],
                preferred_element_type=jnp.float32) + fb2_ref[...]     # (B, E)

    ssq = jnp.sum(z * z, axis=-1, keepdims=True)
    o_ref[...] = (out_scale * z * jax.lax.rsqrt(ssq + L2_EPS)).astype(o_ref.dtype)


# ----------------------------------------------------------------------------
# Wrapper
# ----------------------------------------------------------------------------
def _vmem_caps():
    """(physical VMEM, generation-aware scoped-VMEM cap)."""
    cap = None
    try:
        cap = int(getattr(pltpu.get_tpu_info(), "vmem_capacity_bytes", 0)) or None
    except Exception:
        cap = None
    if cap is None:
        # Conservative fallback: assume the smallest current part (v7x, 64 MiB)
        # so we never request more scoped VMEM than physically exists.
        cap = 64 << 20
    if cap >= (96 << 20):          # v5e / v6e (128 MiB VMEM)
        return cap, 100 << 20
    return cap, 52 << 20           # v7x (64 MiB VMEM)


def embnet_y_forward(y, params, *, scale=3.0, tk=None, num_core_splits=2):
    """y: (B, inSize) f32 or bf16.  params: dict from init_params (see below)."""
    B, in_size = y.shape
    w1 = params["w1"]
    hidden = w1.shape[1]
    emb = params["w2"].shape[1]
    w1_bytes = jnp.dtype(w1.dtype).itemsize
    y_bytes = jnp.dtype(y.dtype).itemsize

    _, limit_cap = _vmem_caps()

    # ---- K-tile size: ~55% of the scoped-VMEM cap for the double-buffered streams ----
    if tk is None:
        per_k_bytes = hidden * w1_bytes + B * y_bytes + 2 * 4      # w1 + y + bn1 per column
        tk = ((int(0.55 * limit_cap) // 2) // per_k_bytes) // 128 * 128
    else:
        tk = (int(tk) // 128) * 128
    tk = max(128, tk)
    if tk >= in_size:
        tk = in_size                                               # single full-width tile

    nk = pl.cdiv(in_size, tk)
    needs_mask = (in_size % tk) != 0
    nc = max(1, min(int(num_core_splits), nk))                     # 2-way split for v7x megacore
    kpc = pl.cdiv(nk, nc)
    has_phantom = (nc * kpc) != nk

    if has_phantom:
        kidx = lambda c, k: jnp.minimum(c * kpc + k, nk - 1)       # keep DMA window in bounds
    else:
        kidx = lambda c, k: c * kpc + k

    inv_b = 1.0 / float(B)

    # ---- scoped VMEM from the actual footprint, clamped generation-aware ----
    stream_bytes = 2 * (B * tk * y_bytes + 2 * tk * 4 + tk * hidden * w1_bytes)
    resident_bytes = 2 * (B * hidden * 4)                          # partial out block
    vmem1 = int(min(limit_cap,
                    max(8 << 20, 1.25 * (stream_bytes + resident_bytes) + (2 << 20))))

    cost1 = pl.CostEstimate(
        flops=2 * B * in_size * hidden + 8 * B * in_size,
        transcendentals=in_size,
        bytes_accessed=(B * in_size * y_bytes + in_size * hidden * w1_bytes
                        + 2 * in_size * 4 + nc * B * hidden * 4),
    )

    stage1 = functools.partial(_stage1_kernel, inv_b, nk, kpc, tk, in_size,
                               needs_mask, has_phantom)

    parts = pl.pallas_call(
        stage1,
        out_shape=jax.ShapeDtypeStruct((nc, B, hidden), jnp.float32),
        grid_spec=pltpu.PrefetchScalarGridSpec(
            num_scalar_prefetch=0,
            grid=(nc, kpc),
            in_specs=[
                pl.BlockSpec((B, tk), lambda c, k: (0, kidx(c, k))),          # y (streamed)
                pl.BlockSpec((2, tk), lambda c, k: (0, kidx(c, k))),          # bn1 gamma/beta
                pl.BlockSpec((tk, hidden), lambda c, k: (kidx(c, k), 0)),     # w1 (streamed)
            ],
            out_specs=pl.BlockSpec((None, B, hidden), lambda c, k: (c, 0, 0)),
        ),
        compiler_params=pltpu.CompilerParams(
            dimension_semantics=("parallel", "arbitrary"),   # core split x K-reduction
            vmem_limit_bytes=vmem1,
        ),
        cost_estimate=cost1,
    )(y, params["bn1"], w1)

    # ---- tiny epilogue call ----
    s2_bytes = (nc * B * hidden * 4 + hidden * emb * 2
                + (6 * hidden + 2 * emb) * 4 + B * emb * 4 + 4 * B * hidden * 4)
    vmem2 = int(min(limit_cap, max(8 << 20, 2 * s2_bytes + (2 << 20))))
    cost2 = pl.CostEstimate(
        flops=2 * B * hidden * emb + 10 * B * hidden,
        transcendentals=hidden + B,
        bytes_accessed=(nc * B * hidden * 4 + hidden * emb * 2
                        + (3 * hidden + emb) * 4 + B * emb * 4),
    )
    stage2 = functools.partial(_stage2_kernel, float(scale), inv_b)

    return pl.pallas_call(
        stage2,
        out_shape=jax.ShapeDtypeStruct((B, emb), jnp.float32),
        grid_spec=pltpu.PrefetchScalarGridSpec(
            num_scalar_prefetch=0,
            grid=(1,),
            in_specs=[
                pl.BlockSpec((nc, B, hidden), lambda i: (0, 0, 0)),
                pl.BlockSpec((1, hidden), lambda i: (0, 0)),
                pl.BlockSpec((1, hidden), lambda i: (0, 0)),
                pl.BlockSpec((2, hidden), lambda i: (0, 0)),
                pl.BlockSpec((hidden, emb), lambda i: (0, 0)),
                pl.BlockSpec((1, emb), lambda i: (0, 0)),
            ],
            out_specs=pl.BlockSpec((B, emb), lambda i: (0, 0)),
        ),
        compiler_params=pltpu.CompilerParams(
            dimension_semantics=("arbitrary",),
            vmem_limit_bytes=vmem2,
        ),
        cost_estimate=cost2,
    )(parts, params["w1_scale"], params["fb1"], params["bn2"],
      params["w2"], params["fb2"])


# ----------------------------------------------------------------------------
# Synthetic parameters + pure-JAX reference
# ----------------------------------------------------------------------------
def init_params(key, in_size, hidden, emb, *, w1_format="bf16"):
    """Deterministic synthetic parameters (shapes from EmbNetY.__init__).

    w1_format: "bf16" (full-fidelity stream) or "int8" (per-output-channel
    symmetric quantization; halves the dominant HBM stream)."""
    ks = jax.random.split(key, 8)
    row = lambda k, n, s: (s * jax.random.normal(k, (1, n))).astype(jnp.float32)

    bn1 = jnp.concatenate(
        [(1.0 + 0.05 * jax.random.normal(ks[0], (1, in_size))).astype(jnp.float32),
         row(ks[1], in_size, 0.05)], axis=0)                       # (2, inSize): gamma; beta

    w1_f32 = jax.random.normal(ks[2], (in_size, hidden)) / jnp.sqrt(in_size)
    if w1_format == "int8":
        s = jnp.maximum(jnp.max(jnp.abs(w1_f32), axis=0, keepdims=True), 1e-12) / 127.0
        w1 = jnp.clip(jnp.round(w1_f32 / s), -127, 127).astype(jnp.int8)
        w1_scale = s.astype(jnp.float32)
    elif w1_format == "bf16":
        w1 = w1_f32.astype(jnp.bfloat16)
        w1_scale = jnp.ones((1, hidden), jnp.float32)
    else:
        raise ValueError(w1_format)

    bn2 = jnp.concatenate(
        [(1.0 + 0.05 * jax.random.normal(ks[4], (1, hidden))).astype(jnp.float32),
         row(ks[5], hidden, 0.05)], axis=0)                        # (2, hidden)

    return {
        "bn1": bn1,
        "w1": w1, "w1_scale": w1_scale,                            # Linear(inSize, 1024), transposed
        "fb1": row(ks[3], hidden, 0.02),
        "bn2": bn2,
        "w2": (jax.random.normal(ks[6], (hidden, emb))
               / jnp.sqrt(hidden)).astype(jnp.bfloat16),           # Linear(1024, emb), transposed
        "fb2": row(ks[7], emb, 0.02),
        # TODO(synk): ybn3 (BatchNorm1d(embedding_dim)) and Softsign exist in
        # __init__ but are never used in forward(); intentionally omitted.
    }


def _reference(y, p, scale):
    """Pure-JAX reference mirroring the kernel's precision/quantization choices."""
    y = y.astype(jnp.float32)
    g1, b1 = p["bn1"][0:1], p["bn1"][1:2]
    mu = jnp.mean(y, axis=0, keepdims=True)
    var = jnp.mean((y - mu) ** 2, axis=0, keepdims=True)
    y = jnp.maximum((y - mu) * jax.lax.rsqrt(var + BN_EPS) * g1 + b1, 0.0)

    h = jnp.dot(y.astype(jnp.bfloat16), p["w1"].astype(jnp.bfloat16),
                preferred_element_type=jnp.float32)
    h = h * p["w1_scale"] + p["fb1"]

    g2, b2 = p["bn2"][0:1], p["bn2"][1:2]
    mu = jnp.mean(h, axis=0, keepdims=True)
    var = jnp.mean((h - mu) ** 2, axis=0, keepdims=True)
    h = jnp.maximum((h - mu) * jax.lax.rsqrt(var + BN_EPS) * g2 + b2, 0.0)

    z = jnp.dot(h.astype(jnp.bfloat16), p["w2"],
                preferred_element_type=jnp.float32) + p["fb2"]
    n = jnp.sqrt(jnp.sum(z * z, axis=1, keepdims=True) + L2_EPS)
    return scale * z / n


if __name__ == "__main__":
    # Small, lane-aligned stand-ins for (pano_size//32)**2 * 512 * {1,2,4}, the
    # 1024-wide hidden layer, and opt.embedding_dim.  tk=512 forces multi-tile
    # K streaming, the 2-way core split, and the f32 accumulation path.
    HIDDEN, EMB, SCALE, B = 1024, 128, 3.0, 8
    key = jax.random.PRNGKey(0)
    k_x, k_p1, k_p2 = jax.random.split(key, 3)

    configs = [
        # (in_size, w1_format, y_dtype, param_key) — cases exercise:
        (2048, "bf16", jnp.float32, k_p1),   # even split, no tail, bf16 weights
        (2048, "int8", jnp.bfloat16, k_p1),  # int8 weight stream + bf16 y stream
        (1408, "int8", jnp.float32, k_p2),   # nk=3: masked tail tile + phantom tile on core 1
    ]
    for in_size, fmt, y_dtype, pk in configs:
        y = jax.random.normal(k_x, (B, in_size), dtype=jnp.float32).astype(y_dtype)
        params = init_params(pk, in_size, HIDDEN, EMB, w1_format=fmt)

        out = embnet_y_forward(y, params, scale=SCALE, tk=512)
        out = jax.block_until_ready(out)

        assert out.shape == (B, EMB)
        norms = jnp.linalg.norm(out, axis=1)
        assert bool(jnp.all(jnp.abs(norms - SCALE) < 1e-3)), (in_size, fmt)

        ref = _reference(y, params, SCALE)
        assert bool(jnp.allclose(out, ref, rtol=1e-2, atol=1e-2)), (in_size, fmt)

    # Also exercise the auto-TK (single full-width tile) path once.
    params = init_params(k_p1, 2048, HIDDEN, EMB, w1_format="bf16")
    y = jax.random.normal(k_x, (B, 2048), dtype=jnp.float32)
    out = jax.block_until_ready(embnet_y_forward(y, params, scale=SCALE))
    assert bool(jnp.allclose(out, _reference(y, params, SCALE), rtol=1e-2, atol=1e-2))

    print("KERNEL_OK")
</pallas_src>

<mosaic_0001>
module attributes {stable_mosaic.version = 11 : i64} {
  func.func @_stage1_kernel(%arg0: i32, %arg1: i32, %arg2: memref<8x512xf32, #tpu.memory_space<vmem>>, %arg3: memref<2x512xf32, #tpu.memory_space<vmem>>, %arg4: memref<512x1024xbf16, #tpu.memory_space<vmem>>, %arg5: memref<1x8x1024xf32, #tpu.memory_space<vmem>>) attributes {dimension_semantics = [#tpu.dimension_semantics<parallel>, #tpu.dimension_semantics<arbitrary>], iteration_bounds = array<i64: 2, 2>, scalar_prefetch = 0 : i64, scratch_operands = 0 : i64, tpu.core_type = #tpu.core_type<tc>, window_params = [{transform_indices = @transform_0, window_bounds = array<i64: 8, 512>}, {transform_indices = @transform_1, window_bounds = array<i64: 2, 512>}, {transform_indices = @transform_2, window_bounds = array<i64: 512, 1024>}, {transform_indices = @transform_3, window_bounds = array<i64: 1, 8, 1024>}]} {
    %c0_i32 = arith.constant 0 : i32
    %0 = arith.cmpi eq, %arg1, %c0_i32 : i32
    %1 = arith.extui %0 : i1 to i32
    %c0_i32_0 = arith.constant 0 : i32
    %2 = arith.cmpi ne, %1, %c0_i32_0 : i32
    scf.if %2 {
      %cst_19 = arith.constant 0.000000e+00 : f32
      %36 = vector.broadcast %cst_19 : f32 to vector<8x1024xf32>
      %c0_20 = arith.constant 0 : index
      %c0_21 = arith.constant 0 : index
      %c0_22 = arith.constant 0 : index
      %37 = vector.load %arg5[%c0_20, %c0_21, %c0_22] : memref<1x8x1024xf32, #tpu.memory_space<vmem>>, vector<1x8x1024xf32>
      %38 = vector.shape_cast %37 : vector<1x8x1024xf32> to vector<8x1024xf32>
      %39 = vector.shape_cast %36 : vector<8x1024xf32> to vector<1x8x1024xf32>
      tpu.vector_store %arg5[%c0_20, %c0_21, %c0_22], %39 {strides = array<i32>} : memref<1x8x1024xf32, #tpu.memory_space<vmem>>, vector<1x8x1024xf32>,
    } else {
    }
    %c0 = arith.constant 0 : index
    %c0_1 = arith.constant 0 : index
    %3 = vector.load %arg2[%c0, %c0_1] : memref<8x512xf32, #tpu.memory_space<vmem>>, vector<8x512xf32>
    %cst = arith.constant dense<0.000000e+00> : vector<512xf32>
    %4 = vector.multi_reduction <add>, %3, %cst [0] : vector<8x512xf32> to vector<512xf32>
    %5 = vector.shape_cast %4 : vector<512xf32> to vector<1x512xf32>
    %cst_2 = arith.constant 1.250000e-01 : f32
    %6 = vector.broadcast %cst_2 : f32 to vector<1x512xf32>
    %7 = arith.mulf %5, %6 : vector<1x512xf32>
    %8 = vector.broadcast %7 : vector<1x512xf32> to vector<8x512xf32>
    %9 = arith.subf %3, %8 : vector<8x512xf32>
    %10 = arith.mulf %9, %9 : vector<8x512xf32>
    %cst_3 = arith.constant dense<0.000000e+00> : vector<512xf32>
    %11 = vector.multi_reduction <add>, %10, %cst_3 [0] : vector<8x512xf32> to vector<512xf32>
    %12 = vector.shape_cast %11 : vector<512xf32> to vector<1x512xf32>
    %cst_4 = arith.constant 1.250000e-01 : f32
    %13 = vector.broadcast %cst_4 : f32 to vector<1x512xf32>
    %14 = arith.mulf %12, %13 : vector<1x512xf32>
    %c0_5 = arith.constant 0 : index
    %c0_6 = arith.constant 0 : index
    %15 = vector.load %arg3[%c0_5, %c0_6] : memref<2x512xf32, #tpu.memory_space<vmem>>, vector<1x512xf32>
    %cst_7 = arith.constant 9.99999974E-6 : f32
    %16 = vector.broadcast %cst_7 : f32 to vector<1x512xf32>
    %17 = arith.addf %14, %16 : vector<1x512xf32>
    %18 = math.rsqrt %17 : vector<1x512xf32>
    %19 = arith.mulf %15, %18 : vector<1x512xf32>
    %20 = vector.broadcast %19 : vector<1x512xf32> to vector<8x512xf32>
    %21 = arith.mulf %9, %20 : vector<8x512xf32>
    %c1 = arith.constant 1 : index
    %c0_8 = arith.constant 0 : index
    %22 = vector.load %arg3[%c1, %c0_8] : memref<2x512xf32, #tpu.memory_space<vmem>>, vector<1x512xf32>
    %23 = vector.broadcast %22 : vector<1x512xf32> to vector<8x512xf32>
    %24 = arith.addf %21, %23 : vector<8x512xf32>
    %cst_9 = arith.constant 0.000000e+00 : f32
    %25 = vector.broadcast %cst_9 : f32 to vector<8x512xf32>
    %26 = arith.maximumf %24, %25 : vector<8x512xf32>
    %c0_10 = arith.constant 0 : index
    %c0_11 = arith.constant 0 : index
    %27 = vector.load %arg4[%c0_10, %c0_11] : memref<512x1024xbf16, #tpu.memory_space<vmem>>, vector<512x1024xbf16>
    %c0_12 = arith.constant 0 : index
    %c0_13 = arith.constant 0 : index
    %c0_14 = arith.constant 0 : index
    %28 = vector.load %arg5[%c0_12, %c0_13, %c0_14] : memref<1x8x1024xf32, #tpu.memory_space<vmem>>, vector<1x8x1024xf32>
    %29 = vector.shape_cast %28 : vector<1x8x1024xf32> to vector<8x1024xf32>
    %30 = arith.truncf %26 : vector<8x512xf32> to vector<8x512xbf16>
    %cst_15 = arith.constant dense<0.000000e+00> : vector<8x1024xf32>
    %31 = tpu.matmul %30, %27, %cst_15 {dimension_numbers = #tpu.dot_dimension_numbers<[1], [0], [0], [1], [0, 0, 1, 1], [], []>} : vector<8x512xbf16>, vector<512x1024xbf16>, vector<8x1024xf32> -> vector<8x1024xf32>
    %32 = arith.addf %29, %31 : vector<8x1024xf32>
    %c0_16 = arith.constant 0 : index
    %c0_17 = arith.constant 0 : index
    %c0_18 = arith.constant 0 : index
    %33 = vector.load %arg5[%c0_16, %c0_17, %c0_18] : memref<1x8x1024xf32, #tpu.memory_space<vmem>>, vector<1x8x1024xf32>
    %34 = vector.shape_cast %33 : vector<1x8x1024xf32> to vector<8x1024xf32>
    %35 = vector.shape_cast %32 : vector<8x1024xf32> to vector<1x8x1024xf32>
    tpu.vector_store %arg5[%c0_16, %c0_17, %c0_18], %35 {strides = array<i32>} : memref<1x8x1024xf32, #tpu.memory_space<vmem>>, vector<1x8x1024xf32>,
    return
  }
  func.func @transform_0(%arg0: i32, %arg1: i32) -> (i32, i32) {
    %c2_i32 = arith.constant 2 : i32
    %0 = arith.muli %arg0, %c2_i32 : i32
    %1 = arith.addi %0, %arg1 : i32
    %c0_i32 = arith.constant 0 : i32
    %c0_i32_0 = arith.constant 0 : i32
    return %c0_i32, %1 : i32, i32
  }
  func.func @transform_1(%arg0: i32, %arg1: i32) -> (i32, i32) {
    %c2_i32 = arith.constant 2 : i32
    %0 = arith.muli %arg0, %c2_i32 : i32
    %1 = arith.addi %0, %arg1 : i32
    %c0_i32 = arith.constant 0 : i32
    %c0_i32_0 = arith.constant 0 : i32
    return %c0_i32, %1 : i32, i32
  }
  func.func @transform_2(%arg0: i32, %arg1: i32) -> (i32, i32) {
    %c2_i32 = arith.constant 2 : i32
    %0 = arith.muli %arg0, %c2_i32 : i32
    %1 = arith.addi %0, %arg1 : i32
    %c0_i32 = arith.constant 0 : i32
    %c0_i32_0 = arith.constant 0 : i32
    return %1, %c0_i32 : i32, i32
  }
  func.func @transform_3(%arg0: i32, %arg1: i32) -> (i32, i32, i32) {
    %c0_i32 = arith.constant 0 : i32
    %c0_i32_0 = arith.constant 0 : i32
    %c0_i32_1 = arith.constant 0 : i32
    return %arg0, %c0_i32, %c0_i32_0 : i32, i32, i32
  }
}

</mosaic_0001>

<llo_original>
// kernel: tpu_custom_call.1
$region0: #{tpu_custom_call.1}
  #allocation0 [shape = 'u32[]', space=smem, size = 0x4, offset = 0x4, fixed_abs, tag = 'smem constant byte address 0x4 - core index']
  #allocation1 [shape = 'u32[72,128]{1,0:T(1,128)}', space=vmem, size = 0x9000, scoped, tag = 'internal scratch']
  %s0 = inlined_call_operand.hbm [shape: f32[8,2048], index: 0, kind: input, shape index: {}]
  %s1 = inlined_call_operand.hbm [shape: f32[2,2048], index: 1, kind: input, shape index: {}]
  %s2 = inlined_call_operand.hbm [shape: bf16[2048,1024], index: 2, kind: input, shape index: {}]
  %s3 = inlined_call_operand.hbm [shape: f32[2,8,1024], index: 3, kind: output, shape index: {}]
  %s4 = sld [smem:[#allocation0]]
  $region61: #{tpu_custom_call.1} parent=0
    _
  %s6 = ssub.s32 1, %s4
  %s7 = scalar_select 0, %s6, %s4
  $region1: #{tpu_custom_call.1} parent=0
    #allocation2 [shape = 'u8[32768]{0}', space=vmem, size = 0x8000, scoped, tag = 'input window, operand 0']
    #allocation3 [shape = 's32[2]{0}', space=sflag, size = 0x8, scoped, tag = 'scoped memory for tpu_custom_call.1']
    #allocation4 [shape = 's32[2]{0}', space=sflag, size = 0x8, scoped, tag = 'scoped memory for tpu_custom_call.1']
    #allocation5 [shape = 'u8[8192]{0}', space=vmem, size = 0x2000, scoped, tag = 'input window, operand 1']
    #allocation6 [shape = 's32[2]{0}', space=sflag, size = 0x8, scoped, tag = 'scoped memory for tpu_custom_call.1']
    #allocation7 [shape = 'u8[2097152]{0}', space=vmem, size = 0x200000, scoped, tag = 'input window, operand 2']
    #allocation8 [shape = 'u8[65536]{0}', space=vmem, size = 0x10000, scoped, tag = 'output window, operand 0']
    %8 = vsyncpa [#allocation3], 0
    %s9 = scalar_lea.sflag [#allocation3], 1
    %10 = vsyncpa %s9, 0
    %11 = vsyncpa [#allocation6], 0
    %s12 = scalar_lea.sflag [#allocation6], 1
    %13 = vsyncpa %s12, 0
    %14 = vsyncpa [#allocation4], 0
    %s15 = scalar_lea.sflag [#allocation4], 1
    %16 = vsyncpa %s15, 0
    loop: start=0, step=1, limit=6
    $region2: #{tpu_custom_call.1} parent=1 // loop_pre_header
      _
    $region3: #{tpu_custom_call.1} parent=1 // loop_header
      %s18 = sphi 0, %s22
      %p19 = scmp.ge.s32.totalorder %s18, 6
      %s25 = sphi 0, %s37
      %s26 = sphi 0, %s33
      %s27 = sphi 0, %s25
      %s28 = sphi 0, %s26
      %s29 = sphi 0, %s27
      %s30 = sphi 0, %s28
      %s44 = sphi 0, %s46
      %s47 = sphi 0, %s44
      %s48 = sphi 0, %s47
      %s64 = sphi 0, %s48
      %s74 = sphi 0, %s76
      %s77 = sphi 0, %s74
      %s78 = sphi 0, %s77
      %s94 = sphi 0, %s78
      %s104 = sphi 0, %s106
      %s107 = sphi 0, %s104
      %s108 = sphi 0, %s107
      %s124 = sphi 0, %s108
      %s130 = sphi 0, %s132
      %s133 = sphi 0, %s130
      %s134 = sphi 0, %s133
      %s150 = sphi 0, %s134
    $region4: #{tpu_custom_call.1} parent=1 // loop_header_branch
      %21 = sbr.rel (%p19) target = $region8
    $region5: #{tpu_custom_call.1} parent=1 // loop_body
      %s23 = ssub.s32 %s18, 1
      %s24 = ssub.s32 %s18, 2
      %s31 = sadd.s32 1, %s26
      %p32 = scmp.ge.s32.totalorder %s31, 2
      %s33 = scalar_select %p32, 0, %s31
      %s34 = sadd.s32 1, %s25
      %s35 = scalar_select %p32, %s34, %s25
      %p36 = scmp.ge.s32.totalorder %s35, 2
      %s37 = scalar_select %p36, 0, %s35
      %s38 = smul.u32 %s25, 2
      %s39 = sadd.s32 %s38, %s26
      %s40 = smul.u32 %s37, 2
      %s41 = sadd.s32 %s40, %s33
      %s42 = ssub.s32 %s39, %s41
      %p43 = scmp.eq.s32.totalorder %s42, 0
      %s45 = sadd.s32 %s44, 1
      %s46 = scalar_select %p43, %s44, %s45
      %p49 = pneg %p43
      %p50 = scmp.eq.s32.totalorder %s18, 3
      %p51 = por %p49, %p50
      %p52 = scmp.ne.s32.totalorder %s44, %s47
      %p53 = scmp.eq.s32.totalorder %s18, 0
      %p54 = por %p52, %p53
      %p55 = scmp.ne.s32.totalorder %s44, %s47
      %p56 = scmp.eq.s32.totalorder %s23, 3
      %p57 = por %p55, %p56
      %p58 = scmp.ne.s32.totalorder %s47, %s48
      %p59 = scmp.eq.s32.totalorder %s23, 0
      %p60 = por %p58, %p59
      %p61 = scmp.ne.s32.totalorder %s47, %s48
      %p62 = scmp.eq.s32.totalorder %s24, 3
      %p63 = por %p61, %p62
      %p65 = scmp.ne.s32.totalorder %s48, %s64
      %p66 = scmp.eq.s32.totalorder %s24, 0
      %p67 = por %p65, %p66
      %s68 = smul.u32 %s25, 2
      %s69 = sadd.s32 %s68, %s26
      %s70 = smul.u32 %s37, 2
      %s71 = sadd.s32 %s70, %s33
      %s72 = ssub.s32 %s69, %s71
      %p73 = scmp.eq.s32.totalorder %s72, 0
      %s75 = sadd.s32 %s74, 1
      %s76 = scalar_select %p73, %s74, %s75
      %p79 = pneg %p73
      %p80 = scmp.eq.s32.totalorder %s18, 3
      %p81 = por %p79, %p80
      %p82 = scmp.ne.s32.totalorder %s74, %s77
      %p83 = scmp.eq.s32.totalorder %s18, 0
      %p84 = por %p82, %p83
      %p85 = scmp.ne.s32.totalorder %s74, %s77
      %p86 = scmp.eq.s32.totalorder %s23, 3
      %p87 = por %p85, %p86
      %p88 = scmp.ne.s32.totalorder %s77, %s78
      %p89 = scmp.eq.s32.totalorder %s23, 0
      %p90 = por %p88, %p89
      %p91 = scmp.ne.s32.totalorder %s77, %s78
      %p92 = scmp.eq.s32.totalorder %s24, 3
      %p93 = por %p91, %p92
      %p95 = scmp.ne.s32.totalorder %s78, %s94
      %p96 = scmp.eq.s32.totalorder %s24, 0
      %p97 = por %p95, %p96
      %s98 = smul.u32 %s25, 2
      %s99 = sadd.s32 %s98, %s26
      %s100 = smul.u32 %s37, 2
      %s101 = sadd.s32 %s100, %s33
      %s102 = ssub.s32 %s99, %s101
      %p103 = scmp.eq.s32.totalorder %s102, 0
      %s105 = sadd.s32 %s104, 1
      %s106 = scalar_select %p103, %s104, %s105
      %p109 = pneg %p103
      %p110 = scmp.eq.s32.totalorder %s18, 3
      %p111 = por %p109, %p110
      %p112 = scmp.ne.s32.totalorder %s104, %s107
      %p113 = scmp.eq.s32.totalorder %s18, 0
      %p114 = por %p112, %p113
      %p115 = scmp.ne.s32.totalorder %s104, %s107
      %p116 = scmp.eq.s32.totalorder %s23, 3
      %p117 = por %p115, %p116
      %p118 = scmp.ne.s32.totalorder %s107, %s108
      %p119 = scmp.eq.s32.totalorder %s23, 0
      %p120 = por %p118, %p119
      %p121 = scmp.ne.s32.totalorder %s107, %s108
      %p122 = scmp.eq.s32.totalorder %s24, 3
      %p123 = por %p121, %p122
      %p125 = scmp.ne.s32.totalorder %s108, %s124
      %p126 = scmp.eq.s32.totalorder %s24, 0
      %p127 = por %p125, %p126
      %s128 = ssub.s32 %s25, %s37
      %p129 = scmp.eq.s32.totalorder %s128, 0
      %s131 = sadd.s32 %s130, 1
      %s132 = scalar_select %p129, %s130, %s131
      %p135 = pneg %p129
      %p136 = scmp.eq.s32.totalorder %s18, 3
      %p137 = por %p135, %p136
      %p138 = scmp.ne.s32.totalorder %s130, %s133
      %p139 = scmp.eq.s32.totalorder %s18, 0
      %p140 = por %p138, %p139
      %p141 = scmp.ne.s32.totalorder %s130, %s133
      %p142 = scmp.eq.s32.totalorder %s23, 3
      %p143 = por %p141, %p142
      %p144 = scmp.ne.s32.totalorder %s133, %s134
      %p145 = scmp.eq.s32.totalorder %s23, 0
      %p146 = por %p144, %p145
      %p147 = scmp.ne.s32.totalorder %s133, %s134
      %p148 = scmp.eq.s32.totalorder %s24, 3
      %p149 = por %p147, %p148
      %p151 = scmp.ne.s32.totalorder %s134, %s150
      %p152 = scmp.eq.s32.totalorder %s24, 0
      %p153 = por %p151, %p152
      %p154 = scmp.le.s32.totalorder 1, %s18
      %p155 = scmp.lt.s32.totalorder %s18, 5
      %p156 = pnand %p154, %p155
      %p157 = pneg %p156
      // Predicated region
      $region9: #{tpu_custom_call.1} parent=5 // pred_check
        _
      $region10: #{tpu_custom_call.1} parent=5 // pred_check_branch
        %159 = sbr.rel (%p156) target = $region12
      $region11: #{tpu_custom_call.1} parent=5 // pred_region
        %s160 = ssub.s32 %s18, 1
      $region12: #{tpu_custom_call.1} parent=5 // pred_fallthru
        _
      %p161 = scmp.lt.s32.totalorder %s18, 4
      // Predicated region
      $region13: #{tpu_custom_call.1} parent=5 // pred_check
        %p162 = pneg %p161
      $region14: #{tpu_custom_call.1} parent=5 // pred_check_branch
        %164 = sbr.rel (%p162) target = $region16
      $region15: #{tpu_custom_call.1} parent=5 // pred_region
        // Predicated region
        $region17: #{tpu_custom_call.1} parent=15 // pred_check
          %p165 = pneg %p54
        $region18: #{tpu_custom_call.1} parent=15 // pred_check_branch
          %167 = sbr.rel (%p165) target = $region20
        $region19: #{tpu_custom_call.1} parent=15 // pred_region
          %s168 = sand.u32 %s44, 1
          %s169 = scalar_lea.sflag [#allocation3], %s168
          %s170 = sand.u32 %s44, 1
          %s171 = smul.addr %s170, 32
          %s172 = scalar_lea.vmem [#allocation2], %s171
          %s173 = smul.u32 %s25, 2
          %s174 = sadd.s32 %s173, %s26
          %s175 = smul.u32 4, %s174
          %177 = vsyncadd %s169, 0
          %s178 = smul.addr %s175, 8
          %s179 = scalar_lea.hbm %s0, %s178
          %s181 = sshll.u32 %s179, 4
          %s182 = int_to_ptr.hbm [resolvable:$true] %s181
          %s183 = sshll.u32 %s172, 4
          %s184 = int_to_ptr.vmem [resolvable:$true] %s183
          %186 = dma.hbm_to_vmem [thread:$0]  %s182, 512, %s184, %s169
        $region20: #{tpu_custom_call.1} parent=15 // pred_fallthru
          _
        // Predicated region
        $region21: #{tpu_custom_call.1} parent=15 // pred_check
          %p187 = pneg %p84
        $region22: #{tpu_custom_call.1} parent=15 // pred_check_branch
          %189 = sbr.rel (%p187) target = $region24
        $region23: #{tpu_custom_call.1} parent=15 // pred_region
          %s190 = sand.u32 %s18, 1
          %s191 = scalar_lea.sflag [#allocation6], %s190
          %s192 = sand.u32 %s74, 1
          %s193 = smul.addr %s192, 8
          %s194 = scalar_lea.vmem [#allocation5], %s193
          %s195 = smul.u32 %s25, 2
          %s196 = sadd.s32 %s195, %s26
          %s197 = smul.u32 4, %s196
          %199 = vsyncadd %s191, 0
          %s200 = smul.addr %s197, 2
          %s201 = scalar_lea.hbm %s1, %s200
          %s203 = sshll.u32 %s201, 4
          %s204 = int_to_ptr.hbm [resolvable:$true] %s203
          %s205 = sshll.u32 %s194, 4
          %s206 = int_to_ptr.vmem [resolvable:$true] %s205
          %208 = dma.hbm_to_vmem [thread:$0]  %s204, 128, %s206, %s191
        $region24: #{tpu_custom_call.1} parent=15 // pred_fallthru
          _
        // Predicated region
        $region25: #{tpu_custom_call.1} parent=15 // pred_check
          %p209 = pneg %p114
        $region26: #{tpu_custom_call.1} parent=15 // pred_check_branch
          %211 = sbr.rel (%p209) target = $region28
        $region27: #{tpu_custom_call.1} parent=15 // pred_region
          %s212 = sand.u32 %s18, 1
          %s213 = scalar_lea.sflag [#allocation6], %s212
          %s214 = sand.u32 %s104, 1
          %s215 = smul.addr %s214, 2048
          %s216 = scalar_lea.vmem [#allocation7], %s215
          %s217 = smul.u32 %s25, 2
          %s218 = sadd.s32 %s217, %s26
          %s219 = smul.u32 64, %s218
          %221 = vsyncadd %s213, 0
          %s222 = smul.addr %s219, 8
          %s223 = smul.addr %s222, 4
          %s224 = scalar_lea.hbm %s2, %s223
          %s225 = sshll.u32 %s224, 4
          %s226 = int_to_ptr.hbm [resolvable:$true] %s225
          %s227 = sshll.u32 %s216, 4
          %s228 = int_to_ptr.vmem [resolvable:$true] %s227
          %233 = dma.hbm_to_vmem [thread:$0]  %s226, 32768, %s228, %s213, 512, 512, 32
        $region28: #{tpu_custom_call.1} parent=15 // pred_fallthru
          _
      $region16: #{tpu_custom_call.1} parent=5 // pred_fallthru
        _
      %p234 = scmp.le.s32.totalorder 1, %s18
      %p235 = scmp.lt.s32.totalorder %s18, 5
      %p236 = pnand %p234, %p235
      %p237 = pneg %p236
      // Predicated region
      $region29: #{tpu_custom_call.1} parent=5 // pred_check
        _
      $region30: #{tpu_custom_call.1} parent=5 // pred_check_branch
        %239 = sbr.rel (%p236) target = $region32
      $region31: #{tpu_custom_call.1} parent=5 // pred_region
        %s240 = ssub.s32 %s18, 1
        %s241 = sand.u32 %s47, 1
        %s242 = scalar_lea.sflag [#allocation3], %s241
        %s243 = sand.u32 %s47, 1
        %s244 = smul.addr %s243, 32
        %s245 = scalar_lea.vmem [#allocation2], %s244
        // Predicated region
        $region33: #{tpu_custom_call.1} parent=31 // pred_check
          %p246 = pneg %p60
        $region34: #{tpu_custom_call.1} parent=31 // pred_check_branch
          %248 = sbr.rel (%p246) target = $region36
        $region35: #{tpu_custom_call.1} parent=31 // pred_region
          %250 = dma.done %s242, 512
        $region36: #{tpu_custom_call.1} parent=31 // pred_fallthru
          _
        %s251 = sand.u32 %s23, 1
        %s252 = scalar_lea.sflag [#allocation6], %s251
        %s253 = sand.u32 %s77, 1
        %s254 = smul.addr %s253, 8
        %s255 = scalar_lea.vmem [#allocation5], %s254
        // Predicated region
        $region37: #{tpu_custom_call.1} parent=31 // pred_check
          %p256 = pneg %p90
        $region38: #{tpu_custom_call.1} parent=31 // pred_check_branch
          %258 = sbr.rel (%p256) target = $region40
        $region39: #{tpu_custom_call.1} parent=31 // pred_region
          %260 = dma.done %s252, 128
        $region40: #{tpu_custom_call.1} parent=31 // pred_fallthru
          _
        %s261 = sand.u32 %s23, 1
        %s262 = scalar_lea.sflag [#allocation6], %s261
        %s263 = sand.u32 %s107, 1
        %s264 = smul.addr %s263, 2048
        %s265 = scalar_lea.vmem [#allocation7], %s264
        // Predicated region
        $region41: #{tpu_custom_call.1} parent=31 // pred_check
          %p266 = pneg %p120
        $region42: #{tpu_custom_call.1} parent=31 // pred_check_branch
          %268 = sbr.rel (%p266) target = $region44
        $region43: #{tpu_custom_call.1} parent=31 // pred_region
          %270 = dma.done %s262, 32768
        $region44: #{tpu_custom_call.1} parent=31 // pred_fallthru
          _
        %s271 = sand.u32 %s47, 1
        %s272 = scalar_lea.sflag [#allocation3], %s271
        %s273 = sand.u32 %s47, 1
        %s274 = smul.addr %s273, 32
        %s275 = scalar_lea.vmem [#allocation2], %s274
        %p276 = pneg %p60
        %p277 = pneg %p57
        %s278 = sand.u32 %s23, 1
        %s279 = scalar_lea.sflag [#allocation6], %s278
        %s280 = sand.u32 %s77, 1
        %s281 = smul.addr %s280, 8
        %s282 = scalar_lea.vmem [#allocation5], %s281
        %p283 = pneg %p90
        %p284 = pneg %p87
        %s285 = sand.u32 %s23, 1
        %s286 = scalar_lea.sflag [#allocation6], %s285
        %s287 = sand.u32 %s107, 1
        %s288 = smul.addr %s287, 2048
        %s289 = scalar_lea.vmem [#allocation7], %s288
        %p290 = pneg %p120
        %p291 = pneg %p117
        %p292 = pneg %p146
        %p293 = pneg %p143
        %s294 = sand.u32 %s133, 1
        %s295 = scalar_lea.sflag [#allocation4], %s294
        %s296 = sand.u32 %s133, 1
        %s297 = smul.addr %s296, 64
        %s298 = scalar_lea.vmem [#allocation8], %s297
        %s299 = smul.u32 %s27, 2
        %s300 = sadd.s32 %s299, %s28
        %s301 = smul.u32 4, %s300
        %s302 = smul.u32 %s27, 2
        %s303 = sadd.s32 %s302, %s28
        %s304 = smul.u32 4, %s303
        %s305 = smul.u32 %s27, 2
        %s306 = sadd.s32 %s305, %s28
        %s307 = smul.u32 64, %s306
        %p308 = scmp.eq.s32.totalorder %s28, 0
        // Predicated region
        $region45: #{tpu_custom_call.1} parent=31 // pred_check
          %p309 = pneg %p308
        $region46: #{tpu_custom_call.1} parent=31 // pred_check_branch
          %311 = sbr.rel (%p309) target = $region48
        $region47: #{tpu_custom_call.1} parent=31 // pred_region
          %312 = vst [vmem:[%s298] sm:$0xff] 0.0
          %313 = vst [vmem:[%s298 + $0x8] sm:$0xff] 0.0
          %314 = vst [vmem:[%s298 + $0x10] sm:$0xff] 0.0
          %315 = vst [vmem:[%s298 + $0x18] sm:$0xff] 0.0
          %316 = vst [vmem:[%s298 + $0x20] sm:$0xff] 0.0
          %317 = vst [vmem:[%s298 + $0x28] sm:$0xff] 0.0
          %318 = vst [vmem:[%s298 + $0x30] sm:$0xff] 0.0
          %319 = vst [vmem:[%s298 + $0x38] sm:$0xff] 0.0
        $region48: #{tpu_custom_call.1} parent=31 // pred_fallthru
          _
        %v320 = vld [vmem:[%s245] sm:$0xff]
        %v321 = vld [vmem:[%s245 + $0x8] sm:$0xff]
        %v322 = vld [vmem:[%s245 + $0x10] sm:$0xff]
        %v323 = vld [vmem:[%s245 + $0x18] sm:$0xff]
        %v324 = vrot.slane %v320, 4
        %v325 = vadd.f32 %v320, %v324
        %v326 = vrot.slane %v325, 2
        %v327 = vadd.f32 %v325, %v326
        %v328 = vrot.slane %v327, 1
        %v329 = vadd.f32 %v327, %v328
        %v330 = vrot.slane %v321, 4
        %v331 = vadd.f32 %v321, %v330
        %v332 = vrot.slane %v331, 2
        %v333 = vadd.f32 %v331, %v332
        %v334 = vrot.slane %v333, 1
        %v335 = vadd.f32 %v333, %v334
        %v336 = vrot.slane %v322, 4
        %v337 = vadd.f32 %v322, %v336
        %v338 = vrot.slane %v337, 2
        %v339 = vadd.f32 %v337, %v338
        %v340 = vrot.slane %v339, 1
        %v341 = vadd.f32 %v339, %v340
        %v342 = vrot.slane %v323, 4
        %v343 = vadd.f32 %v323, %v342
        %v344 = vrot.slane %v343, 2
        %v345 = vadd.f32 %v343, %v344
        %v346 = vrot.slane %v345, 1
        %v347 = vadd.f32 %v345, %v346
        %v348 = vmul.f32 %v329, 0.125
        %v349 = vmul.f32 %v335, 0.125
        %v350 = vmul.f32 %v341, 0.125
        %v351 = vmul.f32 %v347, 0.125
        %v352 = vsub.f32 %v320, %v348
        %v353 = vsub.f32 %v321, %v349
        %v354 = vsub.f32 %v322, %v350
        %v355 = vsub.f32 %v323, %v351
        %v356 = vmul.f32 %v352, %v352
        %v357 = vmul.f32 %v353, %v353
        %v358 = vmul.f32 %v354, %v354
        %v359 = vmul.f32 %v355, %v355
        %v360 = vrot.slane %v356, 4
        %v361 = vadd.f32 %v356, %v360
        %v362 = vrot.slane %v361, 2
        %v363 = vadd.f32 %v361, %v362
        %v364 = vrot.slane %v363, 1
        %v365 = vadd.f32 %v363, %v364
        %v366 = vrot.slane %v357, 4
        %v367 = vadd.f32 %v357, %v366
        %v368 = vrot.slane %v367, 2
        %v369 = vadd.f32 %v367, %v368
        %v370 = vrot.slane %v369, 1
        %v371 = vadd.f32 %v369, %v370
        %v372 = vrot.slane %v358, 4
        %v373 = vadd.f32 %v358, %v372
        %v374 = vrot.slane %v373, 2
        %v375 = vadd.f32 %v373, %v374
        %v376 = vrot.slane %v375, 1
        %v377 = vadd.f32 %v375, %v376
        %v378 = vrot.slane %v359, 4
        %v379 = vadd.f32 %v359, %v378
        %v380 = vrot.slane %v379, 2
        %v381 = vadd.f32 %v379, %v380
        %v382 = vrot.slane %v381, 1
        %v383 = vadd.f32 %v381, %v382
        %v384 = vmul.f32 %v365, 0.125
        %v385 = vmul.f32 %v371, 0.125
        %v386 = vmul.f32 %v377, 0.125
        %v387 = vmul.f32 %v383, 0.125
        %v388 = vld [vmem:[%s255] ss:$2 sm:$0xf]
        %v389 = vadd.f32 %v384, 1e-05
        %v390 = vadd.f32 %v385, 1e-05
        %v391 = vadd.f32 %v386, 1e-05
        %v392 = vadd.f32 %v387, 1e-05
        %v393 = vrsqrt.pop %v389
        %v394 = vmul.f32 %v393, %v389
        %v395 = vmul.f32 %v394, %v393
        %v396 = vmul.f32 0.5, %v395
        %v397 = vsub.f32 1.5, %v396
        %v398 = vmul.f32 %v393, %v397
        %vm399 = vweird.f32 %v389
        %vm400 = vweird.f32 %v393
        %vm401 = vmor %vm399, %vm400
        %v402 = vsel %vm401, %v393, %v398
        %v403 = vrsqrt.pop %v390
        %v404 = vmul.f32 %v403, %v390
        %v405 = vmul.f32 %v404, %v403
        %v406 = vmul.f32 0.5, %v405
        %v407 = vsub.f32 1.5, %v406
        %v408 = vmul.f32 %v403, %v407
        %vm409 = vweird.f32 %v390
        %vm410 = vweird.f32 %v403
        %vm411 = vmor %vm409, %vm410
        %v412 = vsel %vm411, %v403, %v408
        %v413 = vrsqrt.pop %v391
        %v414 = vmul.f32 %v413, %v391
        %v415 = vmul.f32 %v414, %v413
        %v416 = vmul.f32 0.5, %v415
        %v417 = vsub.f32 1.5, %v416
        %v418 = vmul.f32 %v413, %v417
        %vm419 = vweird.f32 %v391
        %vm420 = vweird.f32 %v413
        %vm421 = vmor %vm419, %vm420
        %v422 = vsel %vm421, %v413, %v418
        %v423 = vrsqrt.pop %v392
        %v424 = vmul.f32 %v423, %v392
        %v425 = vmul.f32 %v424, %v423
        %v426 = vmul.f32 0.5, %v425
        %v427 = vsub.f32 1.5, %v426
        %v428 = vmul.f32 %v423, %v427
        %vm429 = vweird.f32 %v392
        %vm430 = vweird.f32 %v423
        %vm431 = vmor %vm429, %vm430
        %v432 = vsel %vm431, %v423, %v428
        %v437 = vrot.slane %v412, 7
        %v438 = vrot.slane %v422, 6
        %v439 = vrot.slane %v432, 5
        %vm440 = vcmask 1040384
        %v441 = vsel %vm440, %v402, %v437
        %vm442 = vcmask 1042434
        %v443 = vsel %vm442, %v438, %v439
        %vm444 = vcmask 1041408
        %v445 = vsel %vm444, %v441, %v443
        %v447 = vmul.f32 %v388, %v445
        %v449 = vperm.slane %v447, 0
        %v450 = vperm.slane %v447, 1
        %v451 = vperm.slane %v447, 2
        %v452 = vperm.slane %v447, 3
        %v457 = vmul.f32 %v352, %v449
        %v458 = vmul.f32 %v353, %v450
        %v459 = vmul.f32 %v354, %v451
        %v460 = vmul.f32 %v355, %v452
        %s461 = scalar_lea.vmem %s255, 1 [#allocation5]
        %v462 = vld [vmem:[%s461] ss:$2 sm:$0xf]
        %v464 = vperm.slane %v462, 0
        %v465 = vperm.slane %v462, 1
        %v466 = vperm.slane %v462, 2
        %v467 = vperm.slane %v462, 3
        %v472 = vadd.f32 %v457, %v464
        %v473 = vadd.f32 %v458, %v465
        %v474 = vadd.f32 %v459, %v466
        %v475 = vadd.f32 %v460, %v467
        %v476 = vmax.f32 %v472, 0.0
        %v477 = vmax.f32 %v473, 0.0
        %v478 = vmax.f32 %v474, 0.0
        %v479 = vmax.f32 %v475, 0.0
        %v480 = vld [vmem:[%s265] sm:$0xff]
        %v481 = vld [vmem:[%s265 + $0x8] sm:$0xff]
        %v482 = vld [vmem:[%s265 + $0x10] sm:$0xff]
        %v483 = vld [vmem:[%s265 + $0x18] sm:$0xff]
        %v484 = vld [vmem:[%s265 + $0x20] sm:$0xff]
        %v485 = vld [vmem:[%s265 + $0x28] sm:$0xff]
        %v486 = vld [vmem:[%s265 + $0x30] sm:$0xff]
        %v487 = vld [vmem:[%s265 + $0x38] sm:$0xff]
        %v488 = vld [vmem:[%s265 + $0x40] sm:$0xff]
        %v489 = vld [vmem:[%s265 + $0x48] sm:$0xff]
        %v490 = vld [vmem:[%s265 + $0x50] sm:$0xff]
        %v491 = vld [vmem:[%s265 + $0x58] sm:$0xff]
        %v492 = vld [vmem:[%s265 + $0x60] sm:$0xff]
        %v493 = vld [vmem:[%s265 + $0x68] sm:$0xff]
        %v494 = vld [vmem:[%s265 + $0x70] sm:$0xff]
        %v495 = vld [vmem:[%s265 + $0x78] sm:$0xff]
        %v496 = vld [vmem:[%s265 + $0x80] sm:$0xff]
        %v497 = vld [vmem:[%s265 + $0x88] sm:$0xff]
        %v498 = vld [vmem:[%s265 + $0x90] sm:$0xff]
        %v499 = vld [vmem:[%s265 + $0x98] sm:$0xff]
        %v500 = vld [vmem:[%s265 + $0xa0] sm:$0xff]
        %v501 = vld [vmem:[%s265 + $0xa8] sm:$0xff]
        %v502 = vld [vmem:[%s265 + $0xb0] sm:$0xff]
        %v503 = vld [vmem:[%s265 + $0xb8] sm:$0xff]
        %v504 = vld [vmem:[%s265 + $0xc0] sm:$0xff]
        %v505 = vld [vmem:[%s265 + $0xc8] sm:$0xff]
        %v506 = vld [vmem:[%s265 + $0xd0] sm:$0xff]
        %v507 = vld [vmem:[%s265 + $0xd8] sm:$0xff]
        %v508 = vld [vmem:[%s265 + $0xe0] sm:$0xff]
        %v509 = vld [vmem:[%s265 + $0xe8] sm:$0xff]
        %v510 = vld [vmem:[%s265 + $0xf0] sm:$0xff]
        %v511 = vld [vmem:[%s265 + $0xf8] sm:$0xff]
        %v512 = vld [vmem:[%s265 + $0x100] sm:$0xff]
        %v513 = vld [vmem:[%s265 + $0x108] sm:$0xff]
        %v514 = vld [vmem:[%s265 + $0x110] sm:$0xff]
        %v515 = vld [vmem:[%s265 + $0x118] sm:$0xff]
        %v516 = vld [vmem:[%s265 + $0x120] sm:$0xff]
        %v517 = vld [vmem:[%s265 + $0x128] sm:$0xff]
        %v518 = vld [vmem:[%s265 + $0x130] sm:$0xff]
        %v519 = vld [vmem:[%s265 + $0x138] sm:$0xff]
        %v520 = vld [vmem:[%s265 + $0x140] sm:$0xff]
        %v521 = vld [vmem:[%s265 + $0x148] sm:$0xff]
        %v522 = vld [vmem:[%s265 + $0x150] sm:$0xff]
        %v523 = vld [vmem:[%s265 + $0x158] sm:$0xff]
        %v524 = vld [vmem:[%s265 + $0x160] sm:$0xff]
        %v525 = vld [vmem:[%s265 + $0x168] sm:$0xff]
        %v526 = vld [vmem:[%s265 + $0x170] sm:$0xff]
        %v527 = vld [vmem:[%s265 + $0x178] sm:$0xff]
        %v528 = vld [vmem:[%s265 + $0x180] sm:$0xff]
        %v529 = vld [vmem:[%s265 + $0x188] sm:$0xff]
        %v530 = vld [vmem:[%s265 + $0x190] sm:$0xff]
        %v531 = vld [vmem:[%s265 + $0x198] sm:$0xff]
        %v532 = vld [vmem:[%s265 + $0x1a0] sm:$0xff]
        %v533 = vld [vmem:[%s265 + $0x1a8] sm:$0xff]
        %v534 = vld [vmem:[%s265 + $0x1b0] sm:$0xff]
        %v535 = vld [vmem:[%s265 + $0x1b8] sm:$0xff]
        %v536 = vld [vmem:[%s265 + $0x1c0] sm:$0xff]
        %v537 = vld [vmem:[%s265 + $0x1c8] sm:$0xff]
        %v538 = vld [vmem:[%s265 + $0x1d0] sm:$0xff]
        %v539 = vld [vmem:[%s265 + $0x1d8] sm:$0xff]
        %v540 = vld [vmem:[%s265 + $0x1e0] sm:$0xff]
        %v541 = vld [vmem:[%s265 + $0x1e8] sm:$0xff]
        %v542 = vld [vmem:[%s265 + $0x1f0] sm:$0xff]
        %v543 = vld [vmem:[%s265 + $0x1f8] sm:$0xff]
        %v544 = vld [vmem:[%s265 + $0x200] sm:$0xff]
        %v545 = vld [vmem:[%s265 + $0x208] sm:$0xff]
        %v546 = vld [vmem:[%s265 + $0x210] sm:$0xff]
        %v547 = vld [vmem:[%s265 + $0x218] sm:$0xff]
        %v548 = vld [vmem:[%s265 + $0x220] sm:$0xff]
        %v549 = vld [vmem:[%s265 + $0x228] sm:$0xff]
        %v550 = vld [vmem:[%s265 + $0x230] sm:$0xff]
        %v551 = vld [vmem:[%s265 + $0x238] sm:$0xff]
        %v552 = vld [vmem:[%s265 + $0x240] sm:$0xff]
        %v553 = vld [vmem:[%s265 + $0x248] sm:$0xff]
        %v554 = vld [vmem:[%s265 + $0x250] sm:$0xff]
        %v555 = vld [vmem:[%s265 + $0x258] sm:$0xff]
        %v556 = vld [vmem:[%s265 + $0x260] sm:$0xff]
        %v557 = vld [vmem:[%s265 + $0x268] sm:$0xff]
        %v558 = vld [vmem:[%s265 + $0x270] sm:$0xff]
        %v559 = vld [vmem:[%s265 + $0x278] sm:$0xff]
        %v560 = vld [vmem:[%s265 + $0x280] sm:$0xff]
        %v561 = vld [vmem:[%s265 + $0x288] sm:$0xff]
        %v562 = vld [vmem:[%s265 + $0x290] sm:$0xff]
        %v563 = vld [vmem:[%s265 + $0x298] sm:$0xff]
        %v564 = vld [vmem:[%s265 + $0x2a0] sm:$0xff]
        %v565 = vld [vmem:[%s265 + $0x2a8] sm:$0xff]
        %v566 = vld [vmem:[%s265 + $0x2b0] sm:$0xff]
        %v567 = vld [vmem:[%s265 + $0x2b8] sm:$0xff]
        %v568 = vld [vmem:[%s265 + $0x2c0] sm:$0xff]
        %v569 = vld [vmem:[%s265 + $0x2c8] sm:$0xff]
        %v570 = vld [vmem:[%s265 + $0x2d0] sm:$0xff]
        %v571 = vld [vmem:[%s265 + $0x2d8] sm:$0xff]
        %v572 = vld [vmem:[%s265 + $0x2e0] sm:$0xff]
        %v573 = vld [vmem:[%s265 + $0x2e8] sm:$0xff]
        %v574 = vld [vmem:[%s265 + $0x2f0] sm:$0xff]
        %v575 = vld [vmem:[%s265 + $0x2f8] sm:$0xff]
        %v576 = vld [vmem:[%s265 + $0x300] sm:$0xff]
        %v577 = vld [vmem:[%s265 + $0x308] sm:$0xff]
        %v578 = vld [vmem:[%s265 + $0x310] sm:$0xff]
        %v579 = vld [vmem:[%s265 + $0x318] sm:$0xff]
        %v580 = vld [vmem:[%s265 + $0x320] sm:$0xff]
        %v581 = vld [vmem:[%s265 + $0x328] sm:$0xff]
        %v582 = vld [vmem:[%s265 + $0x330] sm:$0xff]
        %v583 = vld [vmem:[%s265 + $0x338] sm:$0xff]
        %v584 = vld [vmem:[%s265 + $0x340] sm:$0xff]
        %v585 = vld [vmem:[%s265 + $0x348] sm:$0xff]
        %v586 = vld [vmem:[%s265 + $0x350] sm:$0xff]
        %v587 = vld [vmem:[%s265 + $0x358] sm:$0xff]
        %v588 = vld [vmem:[%s265 + $0x360] sm:$0xff]
        %v589 = vld [vmem:[%s265 + $0x368] sm:$0xff]
        %v590 = vld [vmem:[%s265 + $0x370] sm:$0xff]
        %v591 = vld [vmem:[%s265 + $0x378] sm:$0xff]
        %v592 = vld [vmem:[%s265 + $0x380] sm:$0xff]
        %v593 = vld [vmem:[%s265 + $0x388] sm:$0xff]
        %v594 = vld [vmem:[%s265 + $0x390] sm:$0xff]
        %v595 = vld [vmem:[%s265 + $0x398] sm:$0xff]
        %v596 = vld [vmem:[%s265 + $0x3a0] sm:$0xff]
        %v597 = vld [vmem:[%s265 + $0x3a8] sm:$0xff]
        %v598 = vld [vmem:[%s265 + $0x3b0] sm:$0xff]
        %v599 = vld [vmem:[%s265 + $0x3b8] sm:$0xff]
        %v600 = vld [vmem:[%s265 + $0x3c0] sm:$0xff]
        %v601 = vld [vmem:[%s265 + $0x3c8] sm:$0xff]
        %v602 = vld [vmem:[%s265 + $0x3d0] sm:$0xff]
        %v603 = vld [vmem:[%s265 + $0x3d8] sm:$0xff]
        %v604 = vld [vmem:[%s265 + $0x3e0] sm:$0xff]
        %v605 = vld [vmem:[%s265 + $0x3e8] sm:$0xff]
        %v606 = vld [vmem:[%s265 + $0x3f0] sm:$0xff]
        %v607 = vld [vmem:[%s265 + $0x3f8] sm:$0xff]
        %v608 = vld [vmem:[%s265 + $0x400] sm:$0xff]
        %v609 = vld [vmem:[%s265 + $0x408] sm:$0xff]
        %v610 = vld [vmem:[%s265 + $0x410] sm:$0xff]
        %v611 = vld [vmem:[%s265 + $0x418] sm:$0xff]
        %v612 = vld [vmem:[%s265 + $0x420] sm:$0xff]
        %v613 = vld [vmem:[%s265 + $0x428] sm:$0xff]
        %v614 = vld [vmem:[%s265 + $0x430] sm:$0xff]
        %v615 = vld [vmem:[%s265 + $0x438] sm:$0xff]
        %v616 = vld [vmem:[%s265 + $0x440] sm:$0xff]
        %v617 = vld [vmem:[%s265 + $0x448] sm:$0xff]
        %v618 = vld [vmem:[%s265 + $0x450] sm:$0xff]
        %v619 = vld [vmem:[%s265 + $0x458] sm:$0xff]
        %v620 = vld [vmem:[%s265 + $0x460] sm:$0xff]
        %v621 = vld [vmem:[%s265 + $0x468] sm:$0xff]
        %v622 = vld [vmem:[%s265 + $0x470] sm:$0xff]
        %v623 = vld [vmem:[%s265 + $0x478] sm:$0xff]
        %v624 = vld [vmem:[%s265 + $0x480] sm:$0xff]
        %v625 = vld [vmem:[%s265 + $0x488] sm:$0xff]
        %v626 = vld [vmem:[%s265 + $0x490] sm:$0xff]
        %v627 = vld [vmem:[%s265 + $0x498] sm:$0xff]
        %v628 = vld [vmem:[%s265 + $0x4a0] sm:$0xff]
        %v629 = vld [vmem:[%s265 + $0x4a8] sm:$0xff]
        %v630 = vld [vmem:[%s265 + $0x4b0] sm:$0xff]
        %v631 = vld [vmem:[%s265 + $0x4b8] sm:$0xff]
        %v632 = vld [vmem:[%s265 + $0x4c0] sm:$0xff]
        %v633 = vld [vmem:[%s265 + $0x4c8] sm:$0xff]
        %v634 = vld [vmem:[%s265 + $0x4d0] sm:$0xff]
        %v635 = vld [vmem:[%s265 + $0x4d8] sm:$0xff]
        %v636 = vld [vmem:[%s265 + $0x4e0] sm:$0xff]
        %v637 = vld [vmem:[%s265 + $0x4e8] sm:$0xff]
        %v638 = vld [vmem:[%s265 + $0x4f0] sm:$0xff]
        %v639 = vld [vmem:[%s265 + $0x4f8] sm:$0xff]
        %v640 = vld [vmem:[%s265 + $0x500] sm:$0xff]
        %v641 = vld [vmem:[%s265 + $0x508] sm:$0xff]
        %v642 = vld [vmem:[%s265 + $0x510] sm:$0xff]
        %v643 = vld [vmem:[%s265 + $0x518] sm:$0xff]
        %v644 = vld [vmem:[%s265 + $0x520] sm:$0xff]
        %v645 = vld [vmem:[%s265 + $0x528] sm:$0xff]
        %v646 = vld [vmem:[%s265 + $0x530] sm:$0xff]
        %v647 = vld [vmem:[%s265 + $0x538] sm:$0xff]
        %v648 = vld [vmem:[%s265 + $0x540] sm:$0xff]
        %v649 = vld [vmem:[%s265 + $0x548] sm:$0xff]
        %v650 = vld [vmem:[%s265 + $0x550] sm:$0xff]
        %v651 = vld [vmem:[%s265 + $0x558] sm:$0xff]
        %v652 = vld [vmem:[%s265 + $0x560] sm:$0xff]
        %v653 = vld [vmem:[%s265 + $0x568] sm:$0xff]
        %v654 = vld [vmem:[%s265 + $0x570] sm:$0xff]
        %v655 = vld [vmem:[%s265 + $0x578] sm:$0xff]
        %v656 = vld [vmem:[%s265 + $0x580] sm:$0xff]
        %v657 = vld [vmem:[%s265 + $0x588] sm:$0xff]
        %v658 = vld [vmem:[%s265 + $0x590] sm:$0xff]
        %v659 = vld [vmem:[%s265 + $0x598] sm:$0xff]
        %v660 = vld [vmem:[%s265 + $0x5a0] sm:$0xff]
        %v661 = vld [vmem:[%s265 + $0x5a8] sm:$0xff]
        %v662 = vld [vmem:[%s265 + $0x5b0] sm:$0xff]
        %v663 = vld [vmem:[%s265 + $0x5b8] sm:$0xff]
        %v664 = vld [vmem:[%s265 + $0x5c0] sm:$0xff]
        %v665 = vld [vmem:[%s265 + $0x5c8] sm:$0xff]
        %v666 = vld [vmem:[%s265 + $0x5d0] sm:$0xff]
        %v667 = vld [vmem:[%s265 + $0x5d8] sm:$0xff]
        %v668 = vld [vmem:[%s265 + $0x5e0] sm:$0xff]
        %v669 = vld [vmem:[%s265 + $0x5e8] sm:$0xff]
        %v670 = vld [vmem:[%s265 + $0x5f0] sm:$0xff]
        %v671 = vld [vmem:[%s265 + $0x5f8] sm:$0xff]
        %v672 = vld [vmem:[%s265 + $0x600] sm:$0xff]
        %v673 = vld [vmem:[%s265 + $0x608] sm:$0xff]
        %v674 = vld [vmem:[%s265 + $0x610] sm:$0xff]
        %v675 = vld [vmem:[%s265 + $0x618] sm:$0xff]
        %v676 = vld [vmem:[%s265 + $0x620] sm:$0xff]
        %v677 = vld [vmem:[%s265 + $0x628] sm:$0xff]
        %v678 = vld [vmem:[%s265 + $0x630] sm:$0xff]
        %v679 = vld [vmem:[%s265 + $0x638] sm:$0xff]
        %v680 = vld [vmem:[%s265 + $0x640] sm:$0xff]
        %v681 = vld [vmem:[%s265 + $0x648] sm:$0xff]
        %v682 = vld [vmem:[%s265 + $0x650] sm:$0xff]
        %v683 = vld [vmem:[%s265 + $0x658] sm:$0xff]
        %v684 = vld [vmem:[%s265 + $0x660] sm:$0xff]
        %v685 = vld [vmem:[%s265 + $0x668] sm:$0xff]
        %v686 = vld [vmem:[%s265 + $0x670] sm:$0xff]
        %v687 = vld [vmem:[%s265 + $0x678] sm:$0xff]
        %v688 = vld [vmem:[%s265 + $0x680] sm:$0xff]
        %v689 = vld [vmem:[%s265 + $0x688] sm:$0xff]
        %v690 = vld [vmem:[%s265 + $0x690] sm:$0xff]
        %v691 = vld [vmem:[%s265 + $0x698] sm:$0xff]
        %v692 = vld [vmem:[%s265 + $0x6a0] sm:$0xff]
        %v693 = vld [vmem:[%s265 + $0x6a8] sm:$0xff]
        %v694 = vld [vmem:[%s265 + $0x6b0] sm:$0xff]
        %v695 = vld [vmem:[%s265 + $0x6b8] sm:$0xff]
        %v696 = vld [vmem:[%s265 + $0x6c0] sm:$0xff]
        %v697 = vld [vmem:[%s265 + $0x6c8] sm:$0xff]
        %v698 = vld [vmem:[%s265 + $0x6d0] sm:$0xff]
        %v699 = vld [vmem:[%s265 + $0x6d8] sm:$0xff]
        %v700 = vld [vmem:[%s265 + $0x6e0] sm:$0xff]
        %v701 = vld [vmem:[%s265 + $0x6e8] sm:$0xff]
        %v702 = vld [vmem:[%s265 + $0x6f0] sm:$0xff]
        %v703 = vld [vmem:[%s265 + $0x6f8] sm:$0xff]
        %v704 = vld [vmem:[%s265 + $0x700] sm:$0xff]
        %v705 = vld [vmem:[%s265 + $0x708] sm:$0xff]
        %v706 = vld [vmem:[%s265 + $0x710] sm:$0xff]
        %v707 = vld [vmem:[%s265 + $0x718] sm:$0xff]
        %v708 = vld [vmem:[%s265 + $0x720] sm:$0xff]
        %v709 = vld [vmem:[%s265 + $0x728] sm:$0xff]
        %v710 = vld [vmem:[%s265 + $0x730] sm:$0xff]
        %v711 = vld [vmem:[%s265 + $0x738] sm:$0xff]
        %v712 = vld [vmem:[%s265 + $0x740] sm:$0xff]
        %v713 = vld [vmem:[%s265 + $0x748] sm:$0xff]
        %v714 = vld [vmem:[%s265 + $0x750] sm:$0xff]
        %v715 = vld [vmem:[%s265 + $0x758] sm:$0xff]
        %v716 = vld [vmem:[%s265 + $0x760] sm:$0xff]
        %v717 = vld [vmem:[%s265 + $0x768] sm:$0xff]
        %v718 = vld [vmem:[%s265 + $0x770] sm:$0xff]
        %v719 = vld [vmem:[%s265 + $0x778] sm:$0xff]
        %v720 = vld [vmem:[%s265 + $0x780] sm:$0xff]
        %v721 = vld [vmem:[%s265 + $0x788] sm:$0xff]
        %v722 = vld [vmem:[%s265 + $0x790] sm:$0xff]
        %v723 = vld [vmem:[%s265 + $0x798] sm:$0xff]
        %v724 = vld [vmem:[%s265 + $0x7a0] sm:$0xff]
        %v725 = vld [vmem:[%s265 + $0x7a8] sm:$0xff]
        %v726 = vld [vmem:[%s265 + $0x7b0] sm:$0xff]
        %v727 = vld [vmem:[%s265 + $0x7b8] sm:$0xff]
        %v728 = vld [vmem:[%s265 + $0x7c0] sm:$0xff]
        %v729 = vld [vmem:[%s265 + $0x7c8] sm:$0xff]
        %v730 = vld [vmem:[%s265 + $0x7d0] sm:$0xff]
        %v731 = vld [vmem:[%s265 + $0x7d8] sm:$0xff]
        %v732 = vld [vmem:[%s265 + $0x7e0] sm:$0xff]
        %v733 = vld [vmem:[%s265 + $0x7e8] sm:$0xff]
        %v734 = vld [vmem:[%s265 + $0x7f0] sm:$0xff]
        %v735 = vld [vmem:[%s265 + $0x7f8] sm:$0xff]
        %v736 = vld [vmem:[%s298] sm:$0xff]
        %v737 = vld [vmem:[%s298 + $0x8] sm:$0xff]
        %v738 = vld [vmem:[%s298 + $0x10] sm:$0xff]
        %v739 = vld [vmem:[%s298 + $0x18] sm:$0xff]
        %v740 = vld [vmem:[%s298 + $0x20] sm:$0xff]
        %v741 = vld [vmem:[%s298 + $0x28] sm:$0xff]
        %v742 = vld [vmem:[%s298 + $0x30] sm:$0xff]
        %v743 = vld [vmem:[%s298 + $0x38] sm:$0xff]
        %v744 = vpack.c.bf16 %v476, %v476
        %v745 = vpack.c.bf16 %v477, %v477
        %v746 = vpack.c.bf16 %v478, %v478
        %v747 = vpack.c.bf16 %v479, %v479
        %v1004 = vunpack.c.l.b16 %v480
        %v1005 = vunpack.c.h.b16 %v480
        %v1006 = vunpack.c.l.b16 %v481
        %v1007 = vunpack.c.h.b16 %v481
        %v1008 = vunpack.c.l.b16 %v482
        %v1009 = vunpack.c.h.b16 %v482
        %v1010 = vunpack.c.l.b16 %v483
        %v1011 = vunpack.c.h.b16 %v483
        %v1012 = vunpack.c.l.b16 %v484
        %v1013 = vunpack.c.h.b16 %v484
        %v1014 = vunpack.c.l.b16 %v485
        %v1015 = vunpack.c.h.b16 %v485
        %v1016 = vunpack.c.l.b16 %v486
        %v1017 = vunpack.c.h.b16 %v486
        %v1018 = vunpack.c.l.b16 %v487
        %v1019 = vunpack.c.h.b16 %v487
        %v1020 = vunpack.c.l.b16 %v488
        %v1021 = vunpack.c.h.b16 %v488
        %v1022 = vunpack.c.l.b16 %v489
        %v1023 = vunpack.c.h.b16 %v489
        %v1024 = vunpack.c.l.b16 %v490
        %v1025 = vunpack.c.h.b16 %v490
        %v1026 = vunpack.c.l.b16 %v491
        %v1027 = vunpack.c.h.b16 %v491
        %v1028 = vunpack.c.l.b16 %v492
        %v1029 = vunpack.c.h.b16 %v492
        %v1030 = vunpack.c.l.b16 %v493
        %v1031 = vunpack.c.h.b16 %v493
        %v1032 = vunpack.c.l.b16 %v494
        %v1033 = vunpack.c.h.b16 %v494
        %v1034 = vunpack.c.l.b16 %v495
        %v1035 = vunpack.c.h.b16 %v495
        %v1036 = vunpack.c.l.b16 %v496
        %v1037 = vunpack.c.h.b16 %v496
        %v1038 = vunpack.c.l.b16 %v497
        %v1039 = vunpack.c.h.b16 %v497
        %v1040 = vunpack.c.l.b16 %v498
        %v1041 = vunpack.c.h.b16 %v498
        %v1042 = vunpack.c.l.b16 %v499
        %v1043 = vunpack.c.h.b16 %v499
        %v1044 = vunpack.c.l.b16 %v500
        %v1045 = vunpack.c.h.b16 %v500
        %v1046 = vunpack.c.l.b16 %v501
        %v1047 = vunpack.c.h.b16 %v501
        %v1048 = vunpack.c.l.b16 %v502
        %v1049 = vunpack.c.h.b16 %v502
        %v1050 = vunpack.c.l.b16 %v503
        %v1051 = vunpack.c.h.b16 %v503
        %v1052 = vunpack.c.l.b16 %v504
        %v1053 = vunpack.c.h.b16 %v504
        %v1054 = vunpack.c.l.b16 %v505
        %v1055 = vunpack.c.h.b16 %v505
        %v1056 = vunpack.c.l.b16 %v506
        %v1057 = vunpack.c.h.b16 %v506
        %v1058 = vunpack.c.l.b16 %v507
        %v1059 = vunpack.c.h.b16 %v507
        %v1060 = vunpack.c.l.b16 %v508
        %v1061 = vunpack.c.h.b16 %v508
        %v1062 = vunpack.c.l.b16 %v509
        %v1063 = vunpack.c.h.b16 %v509
        %v1064 = vunpack.c.l.b16 %v510
        %v1065 = vunpack.c.h.b16 %v510
        %v1066 = vunpack.c.l.b16 %v511
        %v1067 = vunpack.c.h.b16 %v511
        %v1068 = vunpack.c.l.b16 %v512
        %v1069 = vunpack.c.h.b16 %v512
        %v1070 = vunpack.c.l.b16 %v513
        %v1071 = vunpack.c.h.b16 %v513
        %v1072 = vunpack.c.l.b16 %v514
        %v1073 = vunpack.c.h.b16 %v514
        %v1074 = vunpack.c.l.b16 %v515
        %v1075 = vunpack.c.h.b16 %v515
        %v1076 = vunpack.c.l.b16 %v516
        %v1077 = vunpack.c.h.b16 %v516
        %v1078 = vunpack.c.l.b16 %v517
        %v1079 = vunpack.c.h.b16 %v517
        %v1080 = vunpack.c.l.b16 %v518
        %v1081 = vunpack.c.h.b16 %v518
        %v1082 = vunpack.c.l.b16 %v519
        %v1083 = vunpack.c.h.b16 %v519
        %v1084 = vunpack.c.l.b16 %v520
        %v1085 = vunpack.c.h.b16 %v520
        %v1086 = vunpack.c.l.b16 %v521
        %v1087 = vunpack.c.h.b16 %v521
        %v1088 = vunpack.c.l.b16 %v522
        %v1089 = vunpack.c.h.b16 %v522
        %v1090 = vunpack.c.l.b16 %v523
        %v1091 = vunpack.c.h.b16 %v523
        %v1092 = vunpack.c.l.b16 %v524
        %v1093 = vunpack.c.h.b16 %v524
        %v1094 = vunpack.c.l.b16 %v525
        %v1095 = vunpack.c.h.b16 %v525
        %v1096 = vunpack.c.l.b16 %v526
        %v1097 = vunpack.c.h.b16 %v526
        %v1098 = vunpack.c.l.b16 %v527
        %v1099 = vunpack.c.h.b16 %v527
        %v1100 = vunpack.c.l.b16 %v528
        %v1101 = vunpack.c.h.b16 %v528
        %v1102 = vunpack.c.l.b16 %v529
        %v1103 = vunpack.c.h.b16 %v529
        %v1104 = vunpack.c.l.b16 %v530
        %v1105 = vunpack.c.h.b16 %v530
        %v1106 = vunpack.c.l.b16 %v531
        %v1107 = vunpack.c.h.b16 %v531
        %v1108 = vunpack.c.l.b16 %v532
        %v1109 = vunpack.c.h.b16 %v532
        %v1110 = vunpack.c.l.b16 %v533
        %v1111 = vunpack.c.h.b16 %v533
        %v1112 = vunpack.c.l.b16 %v534
        %v1113 = vunpack.c.h.b16 %v534
        %v1114 = vunpack.c.l.b16 %v535
        %v1115 = vunpack.c.h.b16 %v535
        %v1116 = vunpack.c.l.b16 %v536
        %v1117 = vunpack.c.h.b16 %v536
        %v1118 = vunpack.c.l.b16 %v537
        %v1119 = vunpack.c.h.b16 %v537
        %v1120 = vunpack.c.l.b16 %v538
        %v1121 = vunpack.c.h.b16 %v538
        %v1122 = vunpack.c.l.b16 %v539
        %v1123 = vunpack.c.h.b16 %v539
        %v1124 = vunpack.c.l.b16 %v540
        %v1125 = vunpack.c.h.b16 %v540
        %v1126 = vunpack.c.l.b16 %v541
        %v1127 = vunpack.c.h.b16 %v541
        %v1128 = vunpack.c.l.b16 %v542
        %v1129 = vunpack.c.h.b16 %v542
        %v1130 = vunpack.c.l.b16 %v543
        %v1131 = vunpack.c.h.b16 %v543
        %v1132 = vunpack.c.l.b16 %v544
        %v1133 = vunpack.c.h.b16 %v544
        %v1134 = vunpack.c.l.b16 %v545
        %v1135 = vunpack.c.h.b16 %v545
        %v1136 = vunpack.c.l.b16 %v546
        %v1137 = vunpack.c.h.b16 %v546
        %v1138 = vunpack.c.l.b16 %v547
        %v1139 = vunpack.c.h.b16 %v547
        %v1140 = vunpack.c.l.b16 %v548
        %v1141 = vunpack.c.h.b16 %v548
        %v1142 = vunpack.c.l.b16 %v549
        %v1143 = vunpack.c.h.b16 %v549
        %v1144 = vunpack.c.l.b16 %v550
        %v1145 = vunpack.c.h.b16 %v550
        %v1146 = vunpack.c.l.b16 %v551
        %v1147 = vunpack.c.h.b16 %v551
        %v1148 = vunpack.c.l.b16 %v552
        %v1149 = vunpack.c.h.b16 %v552
        %v1150 = vunpack.c.l.b16 %v553
        %v1151 = vunpack.c.h.b16 %v553
        %v1152 = vunpack.c.l.b16 %v554
        %v1153 = vunpack.c.h.b16 %v554
        %v1154 = vunpack.c.l.b16 %v555
        %v1155 = vunpack.c.h.b16 %v555
        %v1156 = vunpack.c.l.b16 %v556
        %v1157 = vunpack.c.h.b16 %v556
        %v1158 = vunpack.c.l.b16 %v557
        %v1159 = vunpack.c.h.b16 %v557
        %v1160 = vunpack.c.l.b16 %v558
        %v1161 = vunpack.c.h.b16 %v558
        %v1162 = vunpack.c.l.b16 %v559
        %v1163 = vunpack.c.h.b16 %v559
        %v1164 = vunpack.c.l.b16 %v560
        %v1165 = vunpack.c.h.b16 %v560
        %v1166 = vunpack.c.l.b16 %v561
        %v1167 = vunpack.c.h.b16 %v561
        %v1168 = vunpack.c.l.b16 %v562
        %v1169 = vunpack.c.h.b16 %v562
        %v1170 = vunpack.c.l.b16 %v563
        %v1171 = vunpack.c.h.b16 %v563
        %v1172 = vunpack.c.l.b16 %v564
        %v1173 = vunpack.c.h.b16 %v564
        %v1174 = vunpack.c.l.b16 %v565
        %v1175 = vunpack.c.h.b16 %v565
        %v1176 = vunpack.c.l.b16 %v566
        %v1177 = vunpack.c.h.b16 %v566
        %v1178 = vunpack.c.l.b16 %v567
        %v1179 = vunpack.c.h.b16 %v567
        %v1180 = vunpack.c.l.b16 %v568
        %v1181 = vunpack.c.h.b16 %v568
        %v1182 = vunpack.c.l.b16 %v569
        %v1183 = vunpack.c.h.b16 %v569
        %v1184 = vunpack.c.l.b16 %v570
        %v1185 = vunpack.c.h.b16 %v570
        %v1186 = vunpack.c.l.b16 %v571
        %v1187 = vunpack.c.h.b16 %v571
        %v1188 = vunpack.c.l.b16 %v572
        %v1189 = vunpack.c.h.b16 %v572
        %v1190 = vunpack.c.l.b16 %v573
        %v1191 = vunpack.c.h.b16 %v573
        %v1192 = vunpack.c.l.b16 %v574
        %v1193 = vunpack.c.h.b16 %v574
        %v1194 = vunpack.c.l.b16 %v575
        %v1195 = vunpack.c.h.b16 %v575
        %v1196 = vunpack.c.l.b16 %v576
        %v1197 = vunpack.c.h.b16 %v576
        %v1198 = vunpack.c.l.b16 %v577
        %v1199 = vunpack.c.h.b16 %v577
        %v1200 = vunpack.c.l.b16 %v578
        %v1201 = vunpack.c.h.b16 %v578
        %v1202 = vunpack.c.l.b16 %v579
        %v1203 = vunpack.c.h.b16 %v579
        %v1204 = vunpack.c.l.b16 %v580
        %v1205 = vunpack.c.h.b16 %v580
        %v1206 = vunpack.c.l.b16 %v581
        %v1207 = vunpack.c.h.b16 %v581
        %v1208 = vunpack.c.l.b16 %v582
        %v1209 = vunpack.c.h.b16 %v582
        %v1210 = vunpack.c.l.b16 %v583
        %v1211 = vunpack.c.h.b16 %v583
        %v1212 = vunpack.c.l.b16 %v584
        %v1213 = vunpack.c.h.b16 %v584
        %v1214 = vunpack.c.l.b16 %v585
        %v1215 = vunpack.c.h.b16 %v585
        %v1216 = vunpack.c.l.b16 %v586
        %v1217 = vunpack.c.h.b16 %v586
        %v1218 = vunpack.c.l.b16 %v587
        %v1219 = vunpack.c.h.b16 %v587
        %v1220 = vunpack.c.l.b16 %v588
        %v1221 = vunpack.c.h.b16 %v588
        %v1222 = vunpack.c.l.b16 %v589
        %v1223 = vunpack.c.h.b16 %v589
        %v1224 = vunpack.c.l.b16 %v590
        %v1225 = vunpack.c.h.b16 %v590
        %v1226 = vunpack.c.l.b16 %v591
        %v1227 = vunpack.c.h.b16 %v591
        %v1228 = vunpack.c.l.b16 %v592
        %v1229 = vunpack.c.h.b16 %v592
        %v1230 = vunpack.c.l.b16 %v593
        %v1231 = vunpack.c.h.b16 %v593
        %v1232 = vunpack.c.l.b16 %v594
        %v1233 = vunpack.c.h.b16 %v594
        %v1234 = vunpack.c.l.b16 %v595
        %v1235 = vunpack.c.h.b16 %v595
        %v1236 = vunpack.c.l.b16 %v596
        %v1237 = vunpack.c.h.b16 %v596
        %v1238 = vunpack.c.l.b16 %v597
        %v1239 = vunpack.c.h.b16 %v597
        %v1240 = vunpack.c.l.b16 %v598
        %v1241 = vunpack.c.h.b16 %v598
        %v1242 = vunpack.c.l.b16 %v599
        %v1243 = vunpack.c.h.b16 %v599
        %v1244 = vunpack.c.l.b16 %v600
        %v1245 = vunpack.c.h.b16 %v600
        %v1246 = vunpack.c.l.b16 %v601
        %v1247 = vunpack.c.h.b16 %v601
        %v1248 = vunpack.c.l.b16 %v602
        %v1249 = vunpack.c.h.b16 %v602
        %v1250 = vunpack.c.l.b16 %v603
        %v1251 = vunpack.c.h.b16 %v603
        %v1252 = vunpack.c.l.b16 %v604
        %v1253 = vunpack.c.h.b16 %v604
        %v1254 = vunpack.c.l.b16 %v605
        %v1255 = vunpack.c.h.b16 %v605
        %v1256 = vunpack.c.l.b16 %v606
        %v1257 = vunpack.c.h.b16 %v606
        %v1258 = vunpack.c.l.b16 %v607
        %v1259 = vunpack.c.h.b16 %v607
        %v1260 = vunpack.c.l.b16 %v608
        %v1261 = vunpack.c.h.b16 %v608
        %v1262 = vunpack.c.l.b16 %v609
        %v1263 = vunpack.c.h.b16 %v609
        %v1264 = vunpack.c.l.b16 %v610
        %v1265 = vunpack.c.h.b16 %v610
        %v1266 = vunpack.c.l.b16 %v611
        %v1267 = vunpack.c.h.b16 %v611
        %v1268 = vunpack.c.l.b16 %v612
        %v1269 = vunpack.c.h.b16 %v612
        %v1270 = vunpack.c.l.b16 %v613
        %v1271 = vunpack.c.h.b16 %v613
        %v1272 = vunpack.c.l.b16 %v614
        %v1273 = vunpack.c.h.b16 %v614
        %v1274 = vunpack.c.l.b16 %v615
        %v1275 = vunpack.c.h.b16 %v615
        %v1276 = vunpack.c.l.b16 %v616
        %v1277 = vunpack.c.h.b16 %v616
        %v1278 = vunpack.c.l.b16 %v617
        %v1279 = vunpack.c.h.b16 %v617
        %v1280 = vunpack.c.l.b16 %v618
        %v1281 = vunpack.c.h.b16 %v618
        %v1282 = vunpack.c.l.b16 %v619
        %v1283 = vunpack.c.h.b16 %v619
        %v1284 = vunpack.c.l.b16 %v620
        %v1285 = vunpack.c.h.b16 %v620
        %v1286 = vunpack.c.l.b16 %v621
        %v1287 = vunpack.c.h.b16 %v621
        %v1288 = vunpack.c.l.b16 %v622
        %v1289 = vunpack.c.h.b16 %v622
        %v1290 = vunpack.c.l.b16 %v623
        %v1291 = vunpack.c.h.b16 %v623
        %v1292 = vunpack.c.l.b16 %v624
        %v1293 = vunpack.c.h.b16 %v624
        %v1294 = vunpack.c.l.b16 %v625
        %v1295 = vunpack.c.h.b16 %v625
        %v1296 = vunpack.c.l.b16 %v626
        %v1297 = vunpack.c.h.b16 %v626
        %v1298 = vunpack.c.l.b16 %v627
        %v1299 = vunpack.c.h.b16 %v627
        %v1300 = vunpack.c.l.b16 %v628
        %v1301 = vunpack.c.h.b16 %v628
        %v1302 = vunpack.c.l.b16 %v629
        %v1303 = vunpack.c.h.b16 %v629
        %v1304 = vunpack.c.l.b16 %v630
        %v1305 = vunpack.c.h.b16 %v630
        %v1306 = vunpack.c.l.b16 %v631
        %v1307 = vunpack.c.h.b16 %v631
        %v1308 = vunpack.c.l.b16 %v632
        %v1309 = vunpack.c.h.b16 %v632
        %v1310 = vunpack.c.l.b16 %v633
        %v1311 = vunpack.c.h.b16 %v633
        %v1312 = vunpack.c.l.b16 %v634
        %v1313 = vunpack.c.h.b16 %v634
        %v1314 = vunpack.c.l.b16 %v635
        %v1315 = vunpack.c.h.b16 %v635
        %v1316 = vunpack.c.l.b16 %v636
        %v1317 = vunpack.c.h.b16 %v636
        %v1318 = vunpack.c.l.b16 %v637
        %v1319 = vunpack.c.h.b16 %v637
        %v1320 = vunpack.c.l.b16 %v638
        %v1321 = vunpack.c.h.b16 %v638
        %v1322 = vunpack.c.l.b16 %v639
        %v1323 = vunpack.c.h.b16 %v639
        %v1324 = vunpack.c.l.b16 %v640
        %v1325 = vunpack.c.h.b16 %v640
        %v1326 = vunpack.c.l.b16 %v641
        %v1327 = vunpack.c.h.b16 %v641
        %v1328 = vunpack.c.l.b16 %v642
        %v1329 = vunpack.c.h.b16 %v642
        %v1330 = vunpack.c.l.b16 %v643
        %v1331 = vunpack.c.h.b16 %v643
        %v1332 = vunpack.c.l.b16 %v644
        %v1333 = vunpack.c.h.b16 %v644
        %v1334 = vunpack.c.l.b16 %v645
        %v1335 = vunpack.c.h.b16 %v645
        %v1336 = vunpack.c.l.b16 %v646
        %v1337 = vunpack.c.h.b16 %v646
        %v1338 = vunpack.c.l.b16 %v647
        %v1339 = vunpack.c.h.b16 %v647
        %v1340 = vunpack.c.l.b16 %v648
        %v1341 = vunpack.c.h.b16 %v648
        %v1342 = vunpack.c.l.b16 %v649
        %v1343 = vunpack.c.h.b16 %v649
        %v1344 = vunpack.c.l.b16 %v650
        %v1345 = vunpack.c.h.b16 %v650
        %v1346 = vunpack.c.l.b16 %v651
        %v1347 = vunpack.c.h.b16 %v651
        %v1348 = vunpack.c.l.b16 %v652
        %v1349 = vunpack.c.h.b16 %v652
        %v1350 = vunpack.c.l.b16 %v653
        %v1351 = vunpack.c.h.b16 %v653
        %v1352 = vunpack.c.l.b16 %v654
        %v1353 = vunpack.c.h.b16 %v654
        %v1354 = vunpack.c.l.b16 %v655
        %v1355 = vunpack.c.h.b16 %v655
        %v1356 = vunpack.c.l.b16 %v656
        %v1357 = vunpack.c.h.b16 %v656
        %v1358 = vunpack.c.l.b16 %v657
        %v1359 = vunpack.c.h.b16 %v657
        %v1360 = vunpack.c.l.b16 %v658
        %v1361 = vunpack.c.h.b16 %v658
        %v1362 = vunpack.c.l.b16 %v659
        %v1363 = vunpack.c.h.b16 %v659
        %v1364 = vunpack.c.l.b16 %v660
        %v1365 = vunpack.c.h.b16 %v660
        %v1366 = vunpack.c.l.b16 %v661
        %v1367 = vunpack.c.h.b16 %v661
        %v1368 = vunpack.c.l.b16 %v662
        %v1369 = vunpack.c.h.b16 %v662
        %v1370 = vunpack.c.l.b16 %v663
        %v1371 = vunpack.c.h.b16 %v663
        %v1372 = vunpack.c.l.b16 %v664
        %v1373 = vunpack.c.h.b16 %v664
        %v1374 = vunpack.c.l.b16 %v665
        %v1375 = vunpack.c.h.b16 %v665
        %v1376 = vunpack.c.l.b16 %v666
        %v1377 = vunpack.c.h.b16 %v666
        %v1378 = vunpack.c.l.b16 %v667
        %v1379 = vunpack.c.h.b16 %v667
        %v1380 = vunpack.c.l.b16 %v668
        %v1381 = vunpack.c.h.b16 %v668
        %v1382 = vunpack.c.l.b16 %v669
        %v1383 = vunpack.c.h.b16 %v669
        %v1384 = vunpack.c.l.b16 %v670
        %v1385 = vunpack.c.h.b16 %v670
        %v1386 = vunpack.c.l.b16 %v671
        %v1387 = vunpack.c.h.b16 %v671
        %v1388 = vunpack.c.l.b16 %v672
        %v1389 = vunpack.c.h.b16 %v672
        %v1390 = vunpack.c.l.b16 %v673
        %v1391 = vunpack.c.h.b16 %v673
        %v1392 = vunpack.c.l.b16 %v674
        %v1393 = vunpack.c.h.b16 %v674
        %v1394 = vunpack.c.l.b16 %v675
        %v1395 = vunpack.c.h.b16 %v675
        %v1396 = vunpack.c.l.b16 %v676
        %v1397 = vunpack.c.h.b16 %v676
        %v1398 = vunpack.c.l.b16 %v677
        %v1399 = vunpack.c.h.b16 %v677
        %v1400 = vunpack.c.l.b16 %v678
        %v1401 = vunpack.c.h.b16 %v678
        %v1402 = vunpack.c.l.b16 %v679
        %v1403 = vunpack.c.h.b16 %v679
        %v1404 = vunpack.c.l.b16 %v680
        %v1405 = vunpack.c.h.b16 %v680
        %v1406 = vunpack.c.l.b16 %v681
        %v1407 = vunpack.c.h.b16 %v681
        %v1408 = vunpack.c.l.b16 %v682
        %v1409 = vunpack.c.h.b16 %v682
        %v1410 = vunpack.c.l.b16 %v683
        %v1411 = vunpack.c.h.b16 %v683
        %v1412 = vunpack.c.l.b16 %v684
        %v1413 = vunpack.c.h.b16 %v684
        %v1414 = vunpack.c.l.b16 %v685
        %v1415 = vunpack.c.h.b16 %v685
        %v1416 = vunpack.c.l.b16 %v686
        %v1417 = vunpack.c.h.b16 %v686
        %v1418 = vunpack.c.l.b16 %v687
        %v1419 = vunpack.c.h.b16 %v687
        %v1420 = vunpack.c.l.b16 %v688
        %v1421 = vunpack.c.h.b16 %v688
        %v1422 = vunpack.c.l.b16 %v689
        %v1423 = vunpack.c.h.b16 %v689
        %v1424 = vunpack.c.l.b16 %v690
        %v1425 = vunpack.c.h.b16 %v690
        %v1426 = vunpack.c.l.b16 %v691
        %v1427 = vunpack.c.h.b16 %v691
        %v1428 = vunpack.c.l.b16 %v692
        %v1429 = vunpack.c.h.b16 %v692
        %v1430 = vunpack.c.l.b16 %v693
        %v1431 = vunpack.c.h.b16 %v693
        %v1432 = vunpack.c.l.b16 %v694
        %v1433 = vunpack.c.h.b16 %v694
        %v1434 = vunpack.c.l.b16 %v695
        %v1435 = vunpack.c.h.b16 %v695
        %v1436 = vunpack.c.l.b16 %v696
        %v1437 = vunpack.c.h.b16 %v696
        %v1438 = vunpack.c.l.b16 %v697
        %v1439 = vunpack.c.h.b16 %v697
        %v1440 = vunpack.c.l.b16 %v698
        %v1441 = vunpack.c.h.b16 %v698
        %v1442 = vunpack.c.l.b16 %v699
        %v1443 = vunpack.c.h.b16 %v699
        %v1444 = vunpack.c.l.b16 %v700
        %v1445 = vunpack.c.h.b16 %v700
        %v1446 = vunpack.c.l.b16 %v701
        %v1447 = vunpack.c.h.b16 %v701
        %v1448 = vunpack.c.l.b16 %v702
        %v1449 = vunpack.c.h.b16 %v702
        %v1450 = vunpack.c.l.b16 %v703
        %v1451 = vunpack.c.h.b16 %v703
        %v1452 = vunpack.c.l.b16 %v704
        %v1453 = vunpack.c.h.b16 %v704
        %v1454 = vunpack.c.l.b16 %v705
        %v1455 = vunpack.c.h.b16 %v705
        %v1456 = vunpack.c.l.b16 %v706
        %v1457 = vunpack.c.h.b16 %v706
        %v1458 = vunpack.c.l.b16 %v707
        %v1459 = vunpack.c.h.b16 %v707
        %v1460 = vunpack.c.l.b16 %v708
        %v1461 = vunpack.c.h.b16 %v708
        %v1462 = vunpack.c.l.b16 %v709
        %v1463 = vunpack.c.h.b16 %v709
        %v1464 = vunpack.c.l.b16 %v710
        %v1465 = vunpack.c.h.b16 %v710
        %v1466 = vunpack.c.l.b16 %v711
        %v1467 = vunpack.c.h.b16 %v711
        %v1468 = vunpack.c.l.b16 %v712
        %v1469 = vunpack.c.h.b16 %v712
        %v1470 = vunpack.c.l.b16 %v713
        %v1471 = vunpack.c.h.b16 %v713
        %v1472 = vunpack.c.l.b16 %v714
        %v1473 = vunpack.c.h.b16 %v714
        %v1474 = vunpack.c.l.b16 %v715
        %v1475 = vunpack.c.h.b16 %v715
        %v1476 = vunpack.c.l.b16 %v716
        %v1477 = vunpack.c.h.b16 %v716
        %v1478 = vunpack.c.l.b16 %v717
        %v1479 = vunpack.c.h.b16 %v717
        %v1480 = vunpack.c.l.b16 %v718
        %v1481 = vunpack.c.h.b16 %v718
        %v1482 = vunpack.c.l.b16 %v719
        %v1483 = vunpack.c.h.b16 %v719
        %v1484 = vunpack.c.l.b16 %v720
        %v1485 = vunpack.c.h.b16 %v720
        %v1486 = vunpack.c.l.b16 %v721
        %v1487 = vunpack.c.h.b16 %v721
        %v1488 = vunpack.c.l.b16 %v722
        %v1489 = vunpack.c.h.b16 %v722
        %v1490 = vunpack.c.l.b16 %v723
        %v1491 = vunpack.c.h.b16 %v723
        %v1492 = vunpack.c.l.b16 %v724
        %v1493 = vunpack.c.h.b16 %v724
        %v1494 = vunpack.c.l.b16 %v725
        %v1495 = vunpack.c.h.b16 %v725
        %v1496 = vunpack.c.l.b16 %v726
        %v1497 = vunpack.c.h.b16 %v726
        %v1498 = vunpack.c.l.b16 %v727
        %v1499 = vunpack.c.h.b16 %v727
        %v1500 = vunpack.c.l.b16 %v728
        %v1501 = vunpack.c.h.b16 %v728
        %v1502 = vunpack.c.l.b16 %v729
        %v1503 = vunpack.c.h.b16 %v729
        %v1504 = vunpack.c.l.b16 %v730
        %v1505 = vunpack.c.h.b16 %v730
        %v1506 = vunpack.c.l.b16 %v731
        %v1507 = vunpack.c.h.b16 %v731
        %v1508 = vunpack.c.l.b16 %v732
        %v1509 = vunpack.c.h.b16 %v732
        %v1510 = vunpack.c.l.b16 %v733
        %v1511 = vunpack.c.h.b16 %v733
        %v1512 = vunpack.c.l.b16 %v734
        %v1513 = vunpack.c.h.b16 %v734
        %v1514 = vunpack.c.l.b16 %v735
        %v1515 = vunpack.c.h.b16 %v735
        %v1516 = vpack.c.b16 %v1012, %v1004
        %v1517 = vpack.c.b16 %v1013, %v1005
        %v1518 = vpack.c.b16 %v1014, %v1006
        %v1519 = vpack.c.b16 %v1015, %v1007
        %v1520 = vpack.c.b16 %v1016, %v1008
        %v1521 = vpack.c.b16 %v1017, %v1009
        %v1522 = vpack.c.b16 %v1018, %v1010
        %v1523 = vpack.c.b16 %v1019, %v1011
        %v1524 = vpack.c.b16 %v1028, %v1020
        %v1525 = vpack.c.b16 %v1029, %v1021
        %v1526 = vpack.c.b16 %v1030, %v1022
        %v1527 = vpack.c.b16 %v1031, %v1023
        %v1528 = vpack.c.b16 %v1032, %v1024
        %v1529 = vpack.c.b16 %v1033, %v1025
        %v1530 = vpack.c.b16 %v1034, %v1026
        %v1531 = vpack.c.b16 %v1035, %v1027
        %v1532 = vpack.c.b16 %v1044, %v1036
        %v1533 = vpack.c.b16 %v1045, %v1037
        %v1534 = vpack.c.b16 %v1046, %v1038
        %v1535 = vpack.c.b16 %v1047, %v1039
        %v1536 = vpack.c.b16 %v1048, %v1040
        %v1537 = vpack.c.b16 %v1049, %v1041
        %v1538 = vpack.c.b16 %v1050, %v1042
        %v1539 = vpack.c.b16 %v1051, %v1043
        %v1540 = vpack.c.b16 %v1060, %v1052
        %v1541 = vpack.c.b16 %v1061, %v1053
        %v1542 = vpack.c.b16 %v1062, %v1054
        %v1543 = vpack.c.b16 %v1063, %v1055
        %v1544 = vpack.c.b16 %v1064, %v1056
        %v1545 = vpack.c.b16 %v1065, %v1057
        %v1546 = vpack.c.b16 %v1066, %v1058
        %v1547 = vpack.c.b16 %v1067, %v1059
        %v1548 = vpack.c.b16 %v1076, %v1068
        %v1549 = vpack.c.b16 %v1077, %v1069
        %v1550 = vpack.c.b16 %v1078, %v1070
        %v1551 = vpack.c.b16 %v1079, %v1071
        %v1552 = vpack.c.b16 %v1080, %v1072
        %v1553 = vpack.c.b16 %v1081, %v1073
        %v1554 = vpack.c.b16 %v1082, %v1074
        %v1555 = vpack.c.b16 %v1083, %v1075
        %v1556 = vpack.c.b16 %v1092, %v1084
        %v1557 = vpack.c.b16 %v1093, %v1085
        %v1558 = vpack.c.b16 %v1094, %v1086
        %v1559 = vpack.c.b16 %v1095, %v1087
        %v1560 = vpack.c.b16 %v1096, %v1088
        %v1561 = vpack.c.b16 %v1097, %v1089
        %v1562 = vpack.c.b16 %v1098, %v1090
        %v1563 = vpack.c.b16 %v1099, %v1091
        %v1564 = vpack.c.b16 %v1108, %v1100
        %v1565 = vpack.c.b16 %v1109, %v1101
        %v1566 = vpack.c.b16 %v1110, %v1102
        %v1567 = vpack.c.b16 %v1111, %v1103
        %v1568 = vpack.c.b16 %v1112, %v1104
        %v1569 = vpack.c.b16 %v1113, %v1105
        %v1570 = vpack.c.b16 %v1114, %v1106
        %v1571 = vpack.c.b16 %v1115, %v1107
        %v1572 = vpack.c.b16 %v1124, %v1116
        %v1573 = vpack.c.b16 %v1125, %v1117
        %v1574 = vpack.c.b16 %v1126, %v1118
        %v1575 = vpack.c.b16 %v1127, %v1119
        %v1576 = vpack.c.b16 %v1128, %v1120
        %v1577 = vpack.c.b16 %v1129, %v1121
        %v1578 = vpack.c.b16 %v1130, %v1122
        %v1579 = vpack.c.b16 %v1131, %v1123
        %v1580 = vpack.c.b16 %v1140, %v1132
        %v1581 = vpack.c.b16 %v1141, %v1133
        %v1582 = vpack.c.b16 %v1142, %v1134
        %v1583 = vpack.c.b16 %v1143, %v1135
        %v1584 = vpack.c.b16 %v1144, %v1136
        %v1585 = vpack.c.b16 %v1145, %v1137
        %v1586 = vpack.c.b16 %v1146, %v1138
        %v1587 = vpack.c.b16 %v1147, %v1139
        %v1588 = vpack.c.b16 %v1156, %v1148
        %v1589 = vpack.c.b16 %v1157, %v1149
        %v1590 = vpack.c.b16 %v1158, %v1150
        %v1591 = vpack.c.b16 %v1159, %v1151
        %v1592 = vpack.c.b16 %v1160, %v1152
        %v1593 = vpack.c.b16 %v1161, %v1153
        %v1594 = vpack.c.b16 %v1162, %v1154
        %v1595 = vpack.c.b16 %v1163, %v1155
        %v1596 = vpack.c.b16 %v1172, %v1164
        %v1597 = vpack.c.b16 %v1173, %v1165
        %v1598 = vpack.c.b16 %v1174, %v1166
        %v1599 = vpack.c.b16 %v1175, %v1167
        %v1600 = vpack.c.b16 %v1176, %v1168
        %v1601 = vpack.c.b16 %v1177, %v1169
        %v1602 = vpack.c.b16 %v1178, %v1170
        %v1603 = vpack.c.b16 %v1179, %v1171
        %v1604 = vpack.c.b16 %v1188, %v1180
        %v1605 = vpack.c.b16 %v1189, %v1181
        %v1606 = vpack.c.b16 %v1190, %v1182
        %v1607 = vpack.c.b16 %v1191, %v1183
        %v1608 = vpack.c.b16 %v1192, %v1184
        %v1609 = vpack.c.b16 %v1193, %v1185
        %v1610 = vpack.c.b16 %v1194, %v1186
        %v1611 = vpack.c.b16 %v1195, %v1187
        %v1612 = vpack.c.b16 %v1204, %v1196
        %v1613 = vpack.c.b16 %v1205, %v1197
        %v1614 = vpack.c.b16 %v1206, %v1198
        %v1615 = vpack.c.b16 %v1207, %v1199
        %v1616 = vpack.c.b16 %v1208, %v1200
        %v1617 = vpack.c.b16 %v1209, %v1201
        %v1618 = vpack.c.b16 %v1210, %v1202
        %v1619 = vpack.c.b16 %v1211, %v1203
        %v1620 = vpack.c.b16 %v1220, %v1212
        %v1621 = vpack.c.b16 %v1221, %v1213
        %v1622 = vpack.c.b16 %v1222, %v1214
        %v1623 = vpack.c.b16 %v1223, %v1215
        %v1624 = vpack.c.b16 %v1224, %v1216
        %v1625 = vpack.c.b16 %v1225, %v1217
        %v1626 = vpack.c.b16 %v1226, %v1218
        %v1627 = vpack.c.b16 %v1227, %v1219
        %v1628 = vpack.c.b16 %v1236, %v1228
        %v1629 = vpack.c.b16 %v1237, %v1229
        %v1630 = vpack.c.b16 %v1238, %v1230
        %v1631 = vpack.c.b16 %v1239, %v1231
        %v1632 = vpack.c.b16 %v1240, %v1232
        %v1633 = vpack.c.b16 %v1241, %v1233
        %v1634 = vpack.c.b16 %v1242, %v1234
        %v1635 = vpack.c.b16 %v1243, %v1235
        %v1636 = vpack.c.b16 %v1252, %v1244
        %v1637 = vpack.c.b16 %v1253, %v1245
        %v1638 = vpack.c.b16 %v1254, %v1246
        %v1639 = vpack.c.b16 %v1255, %v1247
        %v1640 = vpack.c.b16 %v1256, %v1248
        %v1641 = vpack.c.b16 %v1257, %v1249
        %v1642 = vpack.c.b16 %v1258, %v1250
        %v1643 = vpack.c.b16 %v1259, %v1251
        %v1644 = vpack.c.b16 %v1268, %v1260
        %v1645 = vpack.c.b16 %v1269, %v1261
        %v1646 = vpack.c.b16 %v1270, %v1262
        %v1647 = vpack.c.b16 %v1271, %v1263
        %v1648 = vpack.c.b16 %v1272, %v1264
        %v1649 = vpack.c.b16 %v1273, %v1265
        %v1650 = vpack.c.b16 %v1274, %v1266
        %v1651 = vpack.c.b16 %v1275, %v1267
        %v1652 = vpack.c.b16 %v1284, %v1276
        %v1653 = vpack.c.b16 %v1285, %v1277
        %v1654 = vpack.c.b16 %v1286, %v1278
        %v1655 = vpack.c.b16 %v1287, %v1279
        %v1656 = vpack.c.b16 %v1288, %v1280
        %v1657 = vpack.c.b16 %v1289, %v1281
        %v1658 = vpack.c.b16 %v1290, %v1282
        %v1659 = vpack.c.b16 %v1291, %v1283
        %v1660 = vpack.c.b16 %v1300, %v1292
        %v1661 = vpack.c.b16 %v1301, %v1293
        %v1662 = vpack.c.b16 %v1302, %v1294
        %v1663 = vpack.c.b16 %v1303, %v1295
        %v1664 = vpack.c.b16 %v1304, %v1296
        %v1665 = vpack.c.b16 %v1305, %v1297
        %v1666 = vpack.c.b16 %v1306, %v1298
        %v1667 = vpack.c.b16 %v1307, %v1299
        %v1668 = vpack.c.b16 %v1316, %v1308
        %v1669 = vpack.c.b16 %v1317, %v1309
        %v1670 = vpack.c.b16 %v1318, %v1310
        %v1671 = vpack.c.b16 %v1319, %v1311
        %v1672 = vpack.c.b16 %v1320, %v1312
        %v1673 = vpack.c.b16 %v1321, %v1313
        %v1674 = vpack.c.b16 %v1322, %v1314
        %v1675 = vpack.c.b16 %v1323, %v1315
        %v1676 = vpack.c.b16 %v1332, %v1324
        %v1677 = vpack.c.b16 %v1333, %v1325
        %v1678 = vpack.c.b16 %v1334, %v1326
        %v1679 = vpack.c.b16 %v1335, %v1327
        %v1680 = vpack.c.b16 %v1336, %v1328
        %v1681 = vpack.c.b16 %v1337, %v1329
        %v1682 = vpack.c.b16 %v1338, %v1330
        %v1683 = vpack.c.b16 %v1339, %v1331
        %v1684 = vpack.c.b16 %v1348, %v1340
        %v1685 = vpack.c.b16 %v1349, %v1341
        %v1686 = vpack.c.b16 %v1350, %v1342
        %v1687 = vpack.c.b16 %v1351, %v1343
        %v1688 = vpack.c.b16 %v1352, %v1344
        %v1689 = vpack.c.b16 %v1353, %v1345
        %v1690 = vpack.c.b16 %v1354, %v1346
        %v1691 = vpack.c.b16 %v1355, %v1347
        %v1692 = vpack.c.b16 %v1364, %v1356
        %v1693 = vpack.c.b16 %v1365, %v1357
        %v1694 = vpack.c.b16 %v1366, %v1358
        %v1695 = vpack.c.b16 %v1367, %v1359
        %v1696 = vpack.c.b16 %v1368, %v1360
        %v1697 = vpack.c.b16 %v1369, %v1361
        %v1698 = vpack.c.b16 %v1370, %v1362
        %v1699 = vpack.c.b16 %v1371, %v1363
        %v1700 = vpack.c.b16 %v1380, %v1372
        %v1701 = vpack.c.b16 %v1381, %v1373
        %v1702 = vpack.c.b16 %v1382, %v1374
        %v1703 = vpack.c.b16 %v1383, %v1375
        %v1704 = vpack.c.b16 %v1384, %v1376
        %v1705 = vpack.c.b16 %v1385, %v1377
        %v1706 = vpack.c.b16 %v1386, %v1378
        %v1707 = vpack.c.b16 %v1387, %v1379
        %v1708 = vpack.c.b16 %v1396, %v1388
        %v1709 = vpack.c.b16 %v1397, %v1389
        %v1710 = vpack.c.b16 %v1398, %v1390
        %v1711 = vpack.c.b16 %v1399, %v1391
        %v1712 = vpack.c.b16 %v1400, %v1392
        %v1713 = vpack.c.b16 %v1401, %v1393
        %v1714 = vpack.c.b16 %v1402, %v1394
        %v1715 = vpack.c.b16 %v1403, %v1395
        %v1716 = vpack.c.b16 %v1412, %v1404
        %v1717 = vpack.c.b16 %v1413, %v1405
        %v1718 = vpack.c.b16 %v1414, %v1406
        %v1719 = vpack.c.b16 %v1415, %v1407
        %v1720 = vpack.c.b16 %v1416, %v1408
        %v1721 = vpack.c.b16 %v1417, %v1409
        %v1722 = vpack.c.b16 %v1418, %v1410
        %v1723 = vpack.c.b16 %v1419, %v1411
        %v1724 = vpack.c.b16 %v1428, %v1420
        %v1725 = vpack.c.b16 %v1429, %v1421
        %v1726 = vpack.c.b16 %v1430, %v1422
        %v1727 = vpack.c.b16 %v1431, %v1423
        %v1728 = vpack.c.b16 %v1432, %v1424
        %v1729 = vpack.c.b16 %v1433, %v1425
        %v1730 = vpack.c.b16 %v1434, %v1426
        %v1731 = vpack.c.b16 %v1435, %v1427
        %v1732 = vpack.c.b16 %v1444, %v1436
        %v1733 = vpack.c.b16 %v1445, %v1437
        %v1734 = vpack.c.b16 %v1446, %v1438
        %v1735 = vpack.c.b16 %v1447, %v1439
        %v1736 = vpack.c.b16 %v1448, %v1440
        %v1737 = vpack.c.b16 %v1449, %v1441
        %v1738 = vpack.c.b16 %v1450, %v1442
        %v1739 = vpack.c.b16 %v1451, %v1443
        %v1740 = vpack.c.b16 %v1460, %v1452
        %v1741 = vpack.c.b16 %v1461, %v1453
        %v1742 = vpack.c.b16 %v1462, %v1454
        %v1743 = vpack.c.b16 %v1463, %v1455
        %v1744 = vpack.c.b16 %v1464, %v1456
        %v1745 = vpack.c.b16 %v1465, %v1457
        %v1746 = vpack.c.b16 %v1466, %v1458
        %v1747 = vpack.c.b16 %v1467, %v1459
        %v1748 = vpack.c.b16 %v1476, %v1468
        %v1749 = vpack.c.b16 %v1477, %v1469
        %v1750 = vpack.c.b16 %v1478, %v1470
        %v1751 = vpack.c.b16 %v1479, %v1471
        %v1752 = vpack.c.b16 %v1480, %v1472
        %v1753 = vpack.c.b16 %v1481, %v1473
        %v1754 = vpack.c.b16 %v1482, %v1474
        %v1755 = vpack.c.b16 %v1483, %v1475
        %v1756 = vpack.c.b16 %v1492, %v1484
        %v1757 = vpack.c.b16 %v1493, %v1485
        %v1758 = vpack.c.b16 %v1494, %v1486
        %v1759 = vpack.c.b16 %v1495, %v1487
        %v1760 = vpack.c.b16 %v1496, %v1488
        %v1761 = vpack.c.b16 %v1497, %v1489
        %v1762 = vpack.c.b16 %v1498, %v1490
        %v1763 = vpack.c.b16 %v1499, %v1491
        %v1764 = vpack.c.b16 %v1508, %v1500
        %v1765 = vpack.c.b16 %v1509, %v1501
        %v1766 = vpack.c.b16 %v1510, %v1502
        %v1767 = vpack.c.b16 %v1511, %v1503
        %v1768 = vpack.c.b16 %v1512, %v1504
        %v1769 = vpack.c.b16 %v1513, %v1505
        %v1770 = vpack.c.b16 %v1514, %v1506
        %v1771 = vpack.c.b16 %v1515, %v1507
        %2028 = vmatpush.bf16.msra.mxu0 %v1572
        %2029 = vmatpush.bf16.msra.mxu0 %v1564
        %2030 = vmatpush.bf16.msra.mxu0 %v1556
        %2031 = vmatpush.bf16.msra.mxu0 %v1548
        %2032 = vmatpush.bf16.msra.mxu0 %v1540
        %2033 = vmatpush.bf16.msra.mxu0 %v1532
        %2034 = vmatpush.bf16.msra.mxu0 %v1524
        %2035 = vmatpush.bf16.msra.mxu0 %v1516
        %2036 = vmatmul.bf16.gmra.mxu0 %v744
        %v2037 = vpop.f32.mrf.mxu0
        %v2038 = vadd.f32 0.0, %v2037
        %v2039 = vpop.f32.mrf.mxu0
        %2040 = vdwg.mxu0
        %2041 = vmatpush.bf16.msra.mxu0 %v1636
        %2042 = vmatpush.bf16.msra.mxu0 %v1628
        %2043 = vmatpush.bf16.msra.mxu0 %v1620
        %2044 = vmatpush.bf16.msra.mxu0 %v1612
        %2045 = vmatpush.bf16.msra.mxu0 %v1604
        %2046 = vmatpush.bf16.msra.mxu0 %v1596
        %2047 = vmatpush.bf16.msra.mxu0 %v1588
        %2048 = vmatpush.bf16.msra.mxu0 %v1580
        %2049 = vmatmul.bf16.gmra.mxu0 %v745
        %v2050 = vpop.f32.mrf.mxu0
        %v2051 = vadd.f32 %v2038, %v2050
        %v2052 = vpop.f32.mrf.mxu0
        %2053 = vdwg.mxu0
        %2054 = vmatpush.bf16.msra.mxu0 %v1700
        %2055 = vmatpush.bf16.msra.mxu0 %v1692
        %2056 = vmatpush.bf16.msra.mxu0 %v1684
        %2057 = vmatpush.bf16.msra.mxu0 %v1676
        %2058 = vmatpush.bf16.msra.mxu0 %v1668
        %2059 = vmatpush.bf16.msra.mxu0 %v1660
        %2060 = vmatpush.bf16.msra.mxu0 %v1652
        %2061 = vmatpush.bf16.msra.mxu0 %v1644
        %2062 = vmatmul.bf16.gmra.mxu0 %v746
        %v2063 = vpop.f32.mrf.mxu0
        %v2064 = vadd.f32 %v2051, %v2063
        %v2065 = vpop.f32.mrf.mxu0
        %2066 = vdwg.mxu0
        %2067 = vmatpush.bf16.msra.mxu0 %v1764
        %2068 = vmatpush.bf16.msra.mxu0 %v1756
        %2069 = vmatpush.bf16.msra.mxu0 %v1748
        %2070 = vmatpush.bf16.msra.mxu0 %v1740
        %2071 = vmatpush.bf16.msra.mxu0 %v1732
        %2072 = vmatpush.bf16.msra.mxu0 %v1724
        %2073 = vmatpush.bf16.msra.mxu0 %v1716
        %2074 = vmatpush.bf16.msra.mxu0 %v1708
        %2075 = vmatmul.bf16.gmra.mxu0 %v747
        %v2076 = vpop.f32.mrf.mxu0
        %v2077 = vadd.f32 %v2064, %v2076
        %v2078 = vpop.f32.mrf.mxu0
        %2079 = vdwg.mxu0
        %2080 = vmatpush.bf16.msra.mxu0 %v1573
        %2081 = vmatpush.bf16.msra.mxu0 %v1565
        %2082 = vmatpush.bf16.msra.mxu0 %v1557
        %2083 = vmatpush.bf16.msra.mxu0 %v1549
        %2084 = vmatpush.bf16.msra.mxu0 %v1541
        %2085 = vmatpush.bf16.msra.mxu0 %v1533
        %2086 = vmatpush.bf16.msra.mxu0 %v1525
        %2087 = vmatpush.bf16.msra.mxu0 %v1517
        %2088 = vmatmul.bf16.gmra.mxu0 %v744
        %v2089 = vpop.f32.mrf.mxu0
        %v2090 = vadd.f32 0.0, %v2089
        %v2091 = vpop.f32.mrf.mxu0
        %2092 = vdwg.mxu0
        %2093 = vmatpush.bf16.msra.mxu0 %v1637
        %2094 = vmatpush.bf16.msra.mxu0 %v1629
        %2095 = vmatpush.bf16.msra.mxu0 %v1621
        %2096 = vmatpush.bf16.msra.mxu0 %v1613
        %2097 = vmatpush.bf16.msra.mxu0 %v1605
        %2098 = vmatpush.bf16.msra.mxu0 %v1597
        %2099 = vmatpush.bf16.msra.mxu0 %v1589
        %2100 = vmatpush.bf16.msra.mxu0 %v1581
        %2101 = vmatmul.bf16.gmra.mxu0 %v745
        %v2102 = vpop.f32.mrf.mxu0
        %v2103 = vadd.f32 %v2090, %v2102
        %v2104 = vpop.f32.mrf.mxu0
        %2105 = vdwg.mxu0
        %2106 = vmatpush.bf16.msra.mxu0 %v1701
        %2107 = vmatpush.bf16.msra.mxu0 %v1693
        %2108 = vmatpush.bf16.msra.mxu0 %v1685
        %2109 = vmatpush.bf16.msra.mxu0 %v1677
        %2110 = vmatpush.bf16.msra.mxu0 %v1669
        %2111 = vmatpush.bf16.msra.mxu0 %v1661
        %2112 = vmatpush.bf16.msra.mxu0 %v1653
        %2113 = vmatpush.bf16.msra.mxu0 %v1645
        %2114 = vmatmul.bf16.gmra.mxu0 %v746
        %v2115 = vpop.f32.mrf.mxu0
        %v2116 = vadd.f32 %v2103, %v2115
        %v2117 = vpop.f32.mrf.mxu0
        %2118 = vdwg.mxu0
        %2119 = vmatpush.bf16.msra.mxu0 %v1765
        %2120 = vmatpush.bf16.msra.mxu0 %v1757
        %2121 = vmatpush.bf16.msra.mxu0 %v1749
        %2122 = vmatpush.bf16.msra.mxu0 %v1741
        %2123 = vmatpush.bf16.msra.mxu0 %v1733
        %2124 = vmatpush.bf16.msra.mxu0 %v1725
        %2125 = vmatpush.bf16.msra.mxu0 %v1717
        %2126 = vmatpush.bf16.msra.mxu0 %v1709
        %2127 = vmatmul.bf16.gmra.mxu0 %v747
        %v2128 = vpop.f32.mrf.mxu0
        %v2129 = vadd.f32 %v2116, %v2128
        %v2130 = vpop.f32.mrf.mxu0
        %2131 = vdwg.mxu0
        %2132 = vmatpush.bf16.msra.mxu0 %v1574
        %2133 = vmatpush.bf16.msra.mxu0 %v1566
        %2134 = vmatpush.bf16.msra.mxu0 %v1558
        %2135 = vmatpush.bf16.msra.mxu0 %v1550
        %2136 = vmatpush.bf16.msra.mxu0 %v1542
        %2137 = vmatpush.bf16.msra.mxu0 %v1534
        %2138 = vmatpush.bf16.msra.mxu0 %v1526
        %2139 = vmatpush.bf16.msra.mxu0 %v1518
        %2140 = vmatmul.bf16.gmra.mxu0 %v744
        %v2141 = vpop.f32.mrf.mxu0
        %v2142 = vadd.f32 0.0, %v2141
        %v2143 = vpop.f32.mrf.mxu0
        %2144 = vdwg.mxu0
        %2145 = vmatpush.bf16.msra.mxu0 %v1638
        %2146 = vmatpush.bf16.msra.mxu0 %v1630
        %2147 = vmatpush.bf16.msra.mxu0 %v1622
        %2148 = vmatpush.bf16.msra.mxu0 %v1614
        %2149 = vmatpush.bf16.msra.mxu0 %v1606
        %2150 = vmatpush.bf16.msra.mxu0 %v1598
        %2151 = vmatpush.bf16.msra.mxu0 %v1590
        %2152 = vmatpush.bf16.msra.mxu0 %v1582
        %2153 = vmatmul.bf16.gmra.mxu0 %v745
        %v2154 = vpop.f32.mrf.mxu0
        %v2155 = vadd.f32 %v2142, %v2154
        %v2156 = vpop.f32.mrf.mxu0
        %2157 = vdwg.mxu0
        %2158 = vmatpush.bf16.msra.mxu0 %v1702
        %2159 = vmatpush.bf16.msra.mxu0 %v1694
        %2160 = vmatpush.bf16.msra.mxu0 %v1686
        %2161 = vmatpush.bf16.msra.mxu0 %v1678
        %2162 = vmatpush.bf16.msra.mxu0 %v1670
        %2163 = vmatpush.bf16.msra.mxu0 %v1662
        %2164 = vmatpush.bf16.msra.mxu0 %v1654
        %2165 = vmatpush.bf16.msra.mxu0 %v1646
        %2166 = vmatmul.bf16.gmra.mxu0 %v746
        %v2167 = vpop.f32.mrf.mxu0
        %v2168 = vadd.f32 %v2155, %v2167
        %v2169 = vpop.f32.mrf.mxu0
        %2170 = vdwg.mxu0
        %2171 = vmatpush.bf16.msra.mxu0 %v1766
        %2172 = vmatpush.bf16.msra.mxu0 %v1758
        %2173 = vmatpush.bf16.msra.mxu0 %v1750
        %2174 = vmatpush.bf16.msra.mxu0 %v1742
        %2175 = vmatpush.bf16.msra.mxu0 %v1734
        %2176 = vmatpush.bf16.msra.mxu0 %v1726
        %2177 = vmatpush.bf16.msra.mxu0 %v1718
        %2178 = vmatpush.bf16.msra.mxu0 %v1710
        %2179 = vmatmul.bf16.gmra.mxu0 %v747
        %v2180 = vpop.f32.mrf.mxu0
        %v2181 = vadd.f32 %v2168, %v2180
        %v2182 = vpop.f32.mrf.mxu0
        %2183 = vdwg.mxu0
        %2184 = vmatpush.bf16.msra.mxu0 %v1575
        %2185 = vmatpush.bf16.msra.mxu0 %v1567
        %2186 = vmatpush.bf16.msra.mxu0 %v1559
        %2187 = vmatpush.bf16.msra.mxu0 %v1551
        %2188 = vmatpush.bf16.msra.mxu0 %v1543
        %2189 = vmatpush.bf16.msra.mxu0 %v1535
        %2190 = vmatpush.bf16.msra.mxu0 %v1527
        %2191 = vmatpush.bf16.msra.mxu0 %v1519
        %2192 = vmatmul.bf16.gmra.mxu0 %v744
        %v2193 = vpop.f32.mrf.mxu0
        %v2194 = vadd.f32 0.0, %v2193
        %v2195 = vpop.f32.mrf.mxu0
        %2196 = vdwg.mxu0
        %2197 = vmatpush.bf16.msra.mxu0 %v1639
        %2198 = vmatpush.bf16.msra.mxu0 %v1631
        %2199 = vmatpush.bf16.msra.mxu0 %v1623
        %2200 = vmatpush.bf16.msra.mxu0 %v1615
        %2201 = vmatpush.bf16.msra.mxu0 %v1607
        %2202 = vmatpush.bf16.msra.mxu0 %v1599
        %2203 = vmatpush.bf16.msra.mxu0 %v1591
        %2204 = vmatpush.bf16.msra.mxu0 %v1583
        %2205 = vmatmul.bf16.gmra.mxu0 %v745
        %v2206 = vpop.f32.mrf.mxu0
        %v2207 = vadd.f32 %v2194, %v2206
        %v2208 = vpop.f32.mrf.mxu0
        %2209 = vdwg.mxu0
        %2210 = vmatpush.bf16.msra.mxu0 %v1703
        %2211 = vmatpush.bf16.msra.mxu0 %v1695
        %2212 = vmatpush.bf16.msra.mxu0 %v1687
        %2213 = vmatpush.bf16.msra.mxu0 %v1679
        %2214 = vmatpush.bf16.msra.mxu0 %v1671
        %2215 = vmatpush.bf16.msra.mxu0 %v1663
        %2216 = vmatpush.bf16.msra.mxu0 %v1655
        %2217 = vmatpush.bf16.msra.mxu0 %v1647
        %2218 = vmatmul.bf16.gmra.mxu0 %v746
        %v2219 = vpop.f32.mrf.mxu0
        %v2220 = vadd.f32 %v2207, %v2219
        %v2221 = vpop.f32.mrf.mxu0
        %2222 = vdwg.mxu0
        %2223 = vmatpush.bf16.msra.mxu0 %v1767
        %2224 = vmatpush.bf16.msra.mxu0 %v1759
        %2225 = vmatpush.bf16.msra.mxu0 %v1751
        %2226 = vmatpush.bf16.msra.mxu0 %v1743
        %2227 = vmatpush.bf16.msra.mxu0 %v1735
        %2228 = vmatpush.bf16.msra.mxu0 %v1727
        %2229 = vmatpush.bf16.msra.mxu0 %v1719
        %2230 = vmatpush.bf16.msra.mxu0 %v1711
        %2231 = vmatmul.bf16.gmra.mxu0 %v747
        %v2232 = vpop.f32.mrf.mxu0
        %v2233 = vadd.f32 %v2220, %v2232
        %v2234 = vpop.f32.mrf.mxu0
        %2235 = vdwg.mxu0
        %2236 = vmatpush.bf16.msra.mxu0 %v1576
        %2237 = vmatpush.bf16.msra.mxu0 %v1568
        %2238 = vmatpush.bf16.msra.mxu0 %v1560
        %2239 = vmatpush.bf16.msra.mxu0 %v1552
        %2240 = vmatpush.bf16.msra.mxu0 %v1544
        %2241 = vmatpush.bf16.msra.mxu0 %v1536
        %2242 = vmatpush.bf16.msra.mxu0 %v1528
        %2243 = vmatpush.bf16.msra.mxu0 %v1520
        %2244 = vmatmul.bf16.gmra.mxu0 %v744
        %v2245 = vpop.f32.mrf.mxu0
        %v2246 = vadd.f32 0.0, %v2245
        %v2247 = vpop.f32.mrf.mxu0
        %2248 = vdwg.mxu0
        %2249 = vmatpush.bf16.msra.mxu0 %v1640
        %2250 = vmatpush.bf16.msra.mxu0 %v1632
        %2251 = vmatpush.bf16.msra.mxu0 %v1624
        %2252 = vmatpush.bf16.msra.mxu0 %v1616
        %2253 = vmatpush.bf16.msra.mxu0 %v1608
        %2254 = vmatpush.bf16.msra.mxu0 %v1600
        %2255 = vmatpush.bf16.msra.mxu0 %v1592
        %2256 = vmatpush.bf16.msra.mxu0 %v1584
        %2257 = vmatmul.bf16.gmra.mxu0 %v745
        %v2258 = vpop.f32.mrf.mxu0
        %v2259 = vadd.f32 %v2246, %v2258
        %v2260 = vpop.f32.mrf.mxu0
        %2261 = vdwg.mxu0
        %2262 = vmatpush.bf16.msra.mxu0 %v1704
        %2263 = vmatpush.bf16.msra.mxu0 %v1696
        %2264 = vmatpush.bf16.msra.mxu0 %v1688
        %2265 = vmatpush.bf16.msra.mxu0 %v1680
        %2266 = vmatpush.bf16.msra.mxu0 %v1672
        %2267 = vmatpush.bf16.msra.mxu0 %v1664
        %2268 = vmatpush.bf16.msra.mxu0 %v1656
        %2269 = vmatpush.bf16.msra.mxu0 %v1648
        %2270 = vmatmul.bf16.gmra.mxu0 %v746
        %v2271 = vpop.f32.mrf.mxu0
        %v2272 = vadd.f32 %v2259, %v2271
        %v2273 = vpop.f32.mrf.mxu0
        %2274 = vdwg.mxu0
        %2275 = vmatpush.bf16.msra.mxu0 %v1768
        %2276 = vmatpush.bf16.msra.mxu0 %v1760
        %2277 = vmatpush.bf16.msra.mxu0 %v1752
        %2278 = vmatpush.bf16.msra.mxu0 %v1744
        %2279 = vmatpush.bf16.msra.mxu0 %v1736
        %2280 = vmatpush.bf16.msra.mxu0 %v1728
        %2281 = vmatpush.bf16.msra.mxu0 %v1720
        %2282 = vmatpush.bf16.msra.mxu0 %v1712
        %2283 = vmatmul.bf16.gmra.mxu0 %v747
        %v2284 = vpop.f32.mrf.mxu0
        %v2285 = vadd.f32 %v2272, %v2284
        %v2286 = vpop.f32.mrf.mxu0
        %2287 = vdwg.mxu0
        %2288 = vmatpush.bf16.msra.mxu0 %v1577
        %2289 = vmatpush.bf16.msra.mxu0 %v1569
        %2290 = vmatpush.bf16.msra.mxu0 %v1561
        %2291 = vmatpush.bf16.msra.mxu0 %v1553
        %2292 = vmatpush.bf16.msra.mxu0 %v1545
        %2293 = vmatpush.bf16.msra.mxu0 %v1537
        %2294 = vmatpush.bf16.msra.mxu0 %v1529
        %2295 = vmatpush.bf16.msra.mxu0 %v1521
        %2296 = vmatmul.bf16.gmra.mxu0 %v744
        %v2297 = vpop.f32.mrf.mxu0
        %v2298 = vadd.f32 0.0, %v2297
        %v2299 = vpop.f32.mrf.mxu0
        %2300 = vdwg.mxu0
        %2301 = vmatpush.bf16.msra.mxu0 %v1641
        %2302 = vmatpush.bf16.msra.mxu0 %v1633
        %2303 = vmatpush.bf16.msra.mxu0 %v1625
        %2304 = vmatpush.bf16.msra.mxu0 %v1617
        %2305 = vmatpush.bf16.msra.mxu0 %v1609
        %2306 = vmatpush.bf16.msra.mxu0 %v1601
        %2307 = vmatpush.bf16.msra.mxu0 %v1593
        %2308 = vmatpush.bf16.msra.mxu0 %v1585
        %2309 = vmatmul.bf16.gmra.mxu0 %v745
        %v2310 = vpop.f32.mrf.mxu0
        %v2311 = vadd.f32 %v2298, %v2310
        %v2312 = vpop.f32.mrf.mxu0
        %2313 = vdwg.mxu0
        %2314 = vmatpush.bf16.msra.mxu0 %v1705
        %2315 = vmatpush.bf16.msra.mxu0 %v1697
        %2316 = vmatpush.bf16.msra.mxu0 %v1689
        %2317 = vmatpush.bf16.msra.mxu0 %v1681
        %2318 = vmatpush.bf16.msra.mxu0 %v1673
        %2319 = vmatpush.bf16.msra.mxu0 %v1665
        %2320 = vmatpush.bf16.msra.mxu0 %v1657
        %2321 = vmatpush.bf16.msra.mxu0 %v1649
        %2322 = vmatmul.bf16.gmra.mxu0 %v746
        %v2323 = vpop.f32.mrf.mxu0
        %v2324 = vadd.f32 %v2311, %v2323
        %v2325 = vpop.f32.mrf.mxu0
        %2326 = vdwg.mxu0
        %2327 = vmatpush.bf16.msra.mxu0 %v1769
        %2328 = vmatpush.bf16.msra.mxu0 %v1761
        %2329 = vmatpush.bf16.msra.mxu0 %v1753
        %2330 = vmatpush.bf16.msra.mxu0 %v1745
        %2331 = vmatpush.bf16.msra.mxu0 %v1737
        %2332 = vmatpush.bf16.msra.mxu0 %v1729
        %2333 = vmatpush.bf16.msra.mxu0 %v1721
        %2334 = vmatpush.bf16.msra.mxu0 %v1713
        %2335 = vmatmul.bf16.gmra.mxu0 %v747
        %v2336 = vpop.f32.mrf.mxu0
        %v2337 = vadd.f32 %v2324, %v2336
        %v2338 = vpop.f32.mrf.mxu0
        %2339 = vdwg.mxu0
        %2340 = vmatpush.bf16.msra.mxu0 %v1578
        %2341 = vmatpush.bf16.msra.mxu0 %v1570
        %2342 = vmatpush.bf16.msra.mxu0 %v1562
        %2343 = vmatpush.bf16.msra.mxu0 %v1554
        %2344 = vmatpush.bf16.msra.mxu0 %v1546
        %2345 = vmatpush.bf16.msra.mxu0 %v1538
        %2346 = vmatpush.bf16.msra.mxu0 %v1530
        %2347 = vmatpush.bf16.msra.mxu0 %v1522
        %2348 = vmatmul.bf16.gmra.mxu0 %v744
        %v2349 = vpop.f32.mrf.mxu0
        %v2350 = vadd.f32 0.0, %v2349
        %v2351 = vpop.f32.mrf.mxu0
        %2352 = vdwg.mxu0
        %2353 = vmatpush.bf16.msra.mxu0 %v1642
        %2354 = vmatpush.bf16.msra.mxu0 %v1634
        %2355 = vmatpush.bf16.msra.mxu0 %v1626
        %2356 = vmatpush.bf16.msra.mxu0 %v1618
        %2357 = vmatpush.bf16.msra.mxu0 %v1610
        %2358 = vmatpush.bf16.msra.mxu0 %v1602
        %2359 = vmatpush.bf16.msra.mxu0 %v1594
        %2360 = vmatpush.bf16.msra.mxu0 %v1586
        %2361 = vmatmul.bf16.gmra.mxu0 %v745
        %v2362 = vpop.f32.mrf.mxu0
        %v2363 = vadd.f32 %v2350, %v2362
        %v2364 = vpop.f32.mrf.mxu0
        %2365 = vdwg.mxu0
        %2366 = vmatpush.bf16.msra.mxu0 %v1706
        %2367 = vmatpush.bf16.msra.mxu0 %v1698
        %2368 = vmatpush.bf16.msra.mxu0 %v1690
        %2369 = vmatpush.bf16.msra.mxu0 %v1682
        %2370 = vmatpush.bf16.msra.mxu0 %v1674
        %2371 = vmatpush.bf16.msra.mxu0 %v1666
        %2372 = vmatpush.bf16.msra.mxu0 %v1658
        %2373 = vmatpush.bf16.msra.mxu0 %v1650
        %2374 = vmatmul.bf16.gmra.mxu0 %v746
        %v2375 = vpop.f32.mrf.mxu0
        %v2376 = vadd.f32 %v2363, %v2375
        %v2377 = vpop.f32.mrf.mxu0
        %2378 = vdwg.mxu0
        %2379 = vmatpush.bf16.msra.mxu0 %v1770
        %2380 = vmatpush.bf16.msra.mxu0 %v1762
        %2381 = vmatpush.bf16.msra.mxu0 %v1754
        %2382 = vmatpush.bf16.msra.mxu0 %v1746
        %2383 = vmatpush.bf16.msra.mxu0 %v1738
        %2384 = vmatpush.bf16.msra.mxu0 %v1730
        %2385 = vmatpush.bf16.msra.mxu0 %v1722
        %2386 = vmatpush.bf16.msra.mxu0 %v1714
        %2387 = vmatmul.bf16.gmra.mxu0 %v747
        %v2388 = vpop.f32.mrf.mxu0
        %v2389 = vadd.f32 %v2376, %v2388
        %v2390 = vpop.f32.mrf.mxu0
        %2391 = vdwg.mxu0
        %2392 = vmatpush.bf16.msra.mxu0 %v1579
        %2393 = vmatpush.bf16.msra.mxu0 %v1571
        %2394 = vmatpush.bf16.msra.mxu0 %v1563
        %2395 = vmatpush.bf16.msra.mxu0 %v1555
        %2396 = vmatpush.bf16.msra.mxu0 %v1547
        %2397 = vmatpush.bf16.msra.mxu0 %v1539
        %2398 = vmatpush.bf16.msra.mxu0 %v1531
        %2399 = vmatpush.bf16.msra.mxu0 %v1523
        %2400 = vmatmul.bf16.gmra.mxu0 %v744
        %v2401 = vpop.f32.mrf.mxu0
        %v2402 = vadd.f32 0.0, %v2401
        %v2403 = vpop.f32.mrf.mxu0
        %2404 = vdwg.mxu0
        %2405 = vmatpush.bf16.msra.mxu0 %v1643
        %2406 = vmatpush.bf16.msra.mxu0 %v1635
        %2407 = vmatpush.bf16.msra.mxu0 %v1627
        %2408 = vmatpush.bf16.msra.mxu0 %v1619
        %2409 = vmatpush.bf16.msra.mxu0 %v1611
        %2410 = vmatpush.bf16.msra.mxu0 %v1603
        %2411 = vmatpush.bf16.msra.mxu0 %v1595
        %2412 = vmatpush.bf16.msra.mxu0 %v1587
        %2413 = vmatmul.bf16.gmra.mxu0 %v745
        %v2414 = vpop.f32.mrf.mxu0
        %v2415 = vadd.f32 %v2402, %v2414
        %v2416 = vpop.f32.mrf.mxu0
        %2417 = vdwg.mxu0
        %2418 = vmatpush.bf16.msra.mxu0 %v1707
        %2419 = vmatpush.bf16.msra.mxu0 %v1699
        %2420 = vmatpush.bf16.msra.mxu0 %v1691
        %2421 = vmatpush.bf16.msra.mxu0 %v1683
        %2422 = vmatpush.bf16.msra.mxu0 %v1675
        %2423 = vmatpush.bf16.msra.mxu0 %v1667
        %2424 = vmatpush.bf16.msra.mxu0 %v1659
        %2425 = vmatpush.bf16.msra.mxu0 %v1651
        %2426 = vmatmul.bf16.gmra.mxu0 %v746
        %v2427 = vpop.f32.mrf.mxu0
        %v2428 = vadd.f32 %v2415, %v2427
        %v2429 = vpop.f32.mrf.mxu0
        %2430 = vdwg.mxu0
        %2431 = vmatpush.bf16.msra.mxu0 %v1771
        %2432 = vmatpush.bf16.msra.mxu0 %v1763
        %2433 = vmatpush.bf16.msra.mxu0 %v1755
        %2434 = vmatpush.bf16.msra.mxu0 %v1747
        %2435 = vmatpush.bf16.msra.mxu0 %v1739
        %2436 = vmatpush.bf16.msra.mxu0 %v1731
        %2437 = vmatpush.bf16.msra.mxu0 %v1723
        %2438 = vmatpush.bf16.msra.mxu0 %v1715
        %2439 = vmatmul.bf16.gmra.mxu0 %v747
        %v2440 = vpop.f32.mrf.mxu0
        %v2441 = vadd.f32 %v2428, %v2440
        %v2442 = vpop.f32.mrf.mxu0
        %2443 = vdwg.mxu0
        %v2444 = vadd.f32 %v736, %v2077
        %v2445 = vadd.f32 %v737, %v2129
        %v2446 = vadd.f32 %v738, %v2181
        %v2447 = vadd.f32 %v739, %v2233
        %v2448 = vadd.f32 %v740, %v2285
        %v2449 = vadd.f32 %v741, %v2337
        %v2450 = vadd.f32 %v742, %v2389
        %v2451 = vadd.f32 %v743, %v2441
        %2452 = vst [vmem:[%s298] sm:$0xff] %v2444
        %2453 = vst [vmem:[%s298 + $0x8] sm:$0xff] %v2445
        %2454 = vst [vmem:[%s298 + $0x10] sm:$0xff] %v2446
        %2455 = vst [vmem:[%s298 + $0x18] sm:$0xff] %v2447
        %2456 = vst [vmem:[%s298 + $0x20] sm:$0xff] %v2448
        %2457 = vst [vmem:[%s298 + $0x28] sm:$0xff] %v2449
        %2458 = vst [vmem:[%s298 + $0x30] sm:$0xff] %v2450
        %2459 = vst [vmem:[%s298 + $0x38] sm:$0xff] %v2451
        %s2460 = sand.u32 %s133, 1
        %s2461 = scalar_lea.sflag [#allocation4], %s2460
        %s2462 = sand.u32 %s133, 1
        %s2463 = smul.addr %s2462, 64
        %s2464 = scalar_lea.vmem [#allocation8], %s2463
        // Predicated region
        $region49: #{tpu_custom_call.1} parent=31 // pred_check
          %p2465 = pneg %p143
        $region50: #{tpu_custom_call.1} parent=31 // pred_check_branch
          %2467 = sbr.rel (%p2465) target = $region52
        $region51: #{tpu_custom_call.1} parent=31 // pred_region
          %2469 = vsyncadd %s2461, 0
          %s2470 = smul.addr %s27, 8
          %s2471 = smul.addr %s2470, 8
          %s2472 = scalar_lea.hbm %s3, %s2471
          %s2474 = sshll.u32 %s2464, 4
          %s2475 = int_to_ptr.vmem [resolvable:$true] %s2474
          %s2476 = sshll.u32 %s2472, 4
          %s2477 = int_to_ptr.hbm [resolvable:$true] %s2476
          %2479 = dma.vmem_to_hbm [thread:$0]  %s2475, 1024, %s2477, %s2461
        $region52: #{tpu_custom_call.1} parent=31 // pred_fallthru
          _
      $region32: #{tpu_custom_call.1} parent=5 // pred_fallthru
        _
      %p2480 = scmp.le.s32.totalorder 2, %s18
      // Predicated region
      $region53: #{tpu_custom_call.1} parent=5 // pred_check
        %p2481 = pneg %p2480
      $region54: #{tpu_custom_call.1} parent=5 // pred_check_branch
        %2483 = sbr.rel (%p2481) target = $region56
      $region55: #{tpu_custom_call.1} parent=5 // pred_region
        %s2484 = ssub.s32 %s18, 2
        // Predicated region
        $region57: #{tpu_custom_call.1} parent=55 // pred_check
          %p2485 = pneg %p149
        $region58: #{tpu_custom_call.1} parent=55 // pred_check_branch
          %2487 = sbr.rel (%p2485) target = $region60
        $region59: #{tpu_custom_call.1} parent=55 // pred_region
          %s2488 = sand.u32 %s134, 1
          %s2489 = scalar_lea.sflag [#allocation4], %s2488
          %s2490 = sand.u32 %s134, 1
          %s2491 = smul.addr %s2490, 64
          %s2492 = scalar_lea.vmem [#allocation8], %s2491
          %2494 = dma.done %s2489, 1024
        $region60: #{tpu_custom_call.1} parent=55 // pred_fallthru
          _
      $region56: #{tpu_custom_call.1} parent=5 // pred_fallthru
        _
    $region6: #{tpu_custom_call.1} parent=1 // loop_footer
      %s22 = sadd.s32 1, %s18
    $region7: #{tpu_custom_call.1} parent=1 // loop_footer_branch
      %17 = sbr.rel target = $region3
    $region8: #{tpu_custom_call.1} parent=1 // loop_exit
      _
    %2495 = vsyncpa [#allocation3], 1
    %s2496 = scalar_lea.sflag [#allocation3], 1
    %2497 = vsyncpa %s2496, 1
    %2498 = vsyncpa [#allocation6], 1
    %s2499 = scalar_lea.sflag [#allocation6], 1
    %2500 = vsyncpa %s2499, 1
    %2501 = vsyncpa [#allocation4], 1
    %s2502 = scalar_lea.sflag [#allocation4], 1
    %2503 = vsyncpa %s2502, 1

</llo_original>
